<compile_context>
chip_gen: v7x
topology: tpu7x:2x2x1
jax: 0.10.0
libtpu: 0.0.40
codegen_flags: <defaults>
</compile_context>

<pallas_src>
import jax
import jax.numpy as jnp
from jax.experimental import pallas as pl
from jax.experimental.pallas import tpu as pltpu

# ---------------- configuration (mirrors TrainingConfig / GNN hyperparams) ----
EMB_DIM = 32              # config.emb_dim
HID = 2 * EMB_DIM         # GIN MLP hidden dim
NUM_LAYERS = 3            # gnn.num_layer  (JK = 'last' -> head input dim = EMB_DIM)
NUM_TASKS = 4
NUM_ATOM_TYPE = 120
NUM_CHIRALITY = 3
NUM_BOND_TYPE = 6         # incl. self-loop type 4
NUM_BOND_DIR = 3
BN_EPS = 1e-5

# block-diagonal packing: 8 graphs x 16 nodes = 128 nodes per kernel step
NODES_PER_GRAPH = 16
GRAPHS_PER_BATCH = 8
N_NODES = NODES_PER_GRAPH * GRAPHS_PER_BATCH      # 128 (MXU/lane friendly)
EDGES_PER_GRAPH = 32
N_EDGES = EDGES_PER_GRAPH * GRAPHS_PER_BATCH      # 256
NUM_BATCHES = 2                                   # grid extent (parallel axis)

# bf16 matmul-weight slab, per layer l  (shape [NUM_LAYERS, 3D, 2D] = [3, 96, 64]):
#   rows [0, D)    cols [0, 2D) : w1[l]              (D x 2D)
#   rows [D, 3D)   cols [0, D)  : w2_folded[l]       (2D x D, eval BN folded in)
WMAT_ROWS = 3 * EMB_DIM           # 96 (bf16 sublane-16 aligned)

# f32 small slab (biases + head), shape [8 + D, 2D] = [40, 64]:
#   row  l           cols [0, 2D) : b1[l]
#   row  4 + l       cols [0, D)  : b2_folded[l]
#   row  7           cols [0, T)  : b_head
#   rows [8, 8 + D)  cols [0, T)  : w_head
WSMALL_ROWS = 8 + EMB_DIM         # 40 (sublane-8 aligned)


# ---------------- Pallas kernel ----------------------------------------------
def graphpred_kernel(wmat_ref, wsmall_ref, hx_ref, a_ref, pool_ref, out_ref):
    D = EMB_DIM
    a = a_ref[...]                        # [N, N]   bf16 block-diag adjacency (+ self loops)
    ws = wsmall_ref[...]                  # [40, 2D] f32 biases + head (VMEM resident)
    h_bf = hx_ref[0]                      # [N, D]   bf16 initial node embeddings
    h_f32 = h_bf.astype(jnp.float32)

    for l in range(NUM_LAYERS):           # static unrolled layer loop
        wl = wmat_ref[l]                  # [3D, 2D] bf16 weight slab slice (VMEM resident)
        w1 = wl[:D, :]                    # [D, 2D]
        w2 = wl[D:3 * D, :D]              # [2D, D]  (BN scale folded in)
        b1 = ws[l:l + 1, :]               # [1, 2D]  f32
        b2 = ws[4 + l:5 + l, :D]          # [1, D]   f32 (BN shift folded in)

        # GINConv aggregation: (neighbors + self loop) + summed edge embeddings
        agg = jnp.dot(a, h_bf, preferred_element_type=jnp.float32) \
            + hx_ref[l + 1].astype(jnp.float32)                          # [N, D]

        # GIN MLP: Linear(D->2D) -> ReLU -> Linear(2D->D); eval BatchNorm folded into w2/b2.
        # TODO(synk): training-mode BatchNorm (batch statistics) not implemented; eval mode used.
        h1 = jnp.maximum(
            jnp.dot(agg.astype(jnp.bfloat16), w1,
                    preferred_element_type=jnp.float32) + b1, 0.0)       # [N, 2D]
        h_f32 = jnp.dot(h1.astype(jnp.bfloat16), w2,
                        preferred_element_type=jnp.float32) + b2         # [N, D]
        if l < NUM_LAYERS - 1:            # ReLU between layers (dropout = identity at inference)
            h_f32 = jnp.maximum(h_f32, 0.0)
            h_bf = h_f32.astype(jnp.bfloat16)   # bf16 copy only needed for next layer's A@H

    # global_mean_pool:  P @ H   -> [B, D]   (f32; exact 1/count pool weights)
    pooled = jnp.dot(pool_ref[...], h_f32, preferred_element_type=jnp.float32)

    # downstream_head: Linear(D -> num_tasks), kept exact f32
    wh = ws[8:8 + D, :NUM_TASKS]          # [D, T]
    bh = ws[7:8, :NUM_TASKS]              # [1, T]
    out_ref[...] = jnp.dot(pooled, wh, preferred_element_type=jnp.float32) + bh


def graphpred_forward(wmat, wsmall, hx, A, pool_mat):
    D = EMB_DIM
    return pl.pallas_call(
        graphpred_kernel,
        out_shape=jax.ShapeDtypeStruct((NUM_BATCHES, GRAPHS_PER_BATCH, NUM_TASKS), jnp.float32),
        grid=(NUM_BATCHES,),
        in_specs=[
            # weights: constant block index -> stay resident in VMEM across grid steps
            pl.BlockSpec((NUM_LAYERS, WMAT_ROWS, HID), lambda i: (0, 0, 0)),
            pl.BlockSpec((WSMALL_ROWS, HID), lambda i: (0, 0)),
            # per-batch graph data (double-buffered by the Pallas pipeline)
            pl.BlockSpec((pl.Squeezed(), NUM_LAYERS + 1, N_NODES, D), lambda i: (i, 0, 0, 0)),
            pl.BlockSpec((pl.Squeezed(), N_NODES, N_NODES), lambda i: (i, 0, 0)),
            pl.BlockSpec((pl.Squeezed(), GRAPHS_PER_BATCH, N_NODES), lambda i: (i, 0, 0)),
        ],
        out_specs=pl.BlockSpec((pl.Squeezed(), GRAPHS_PER_BATCH, NUM_TASKS), lambda i: (i, 0, 0)),
        compiler_params=pltpu.CompilerParams(dimension_semantics=("parallel",)),
    )(wmat, wsmall, hx, A, pool_mat)


# ---------------- glue: parameters, BN folding, slab packing, densification ---
def init_params(key):
    ks = jax.random.split(key, 7)
    s = 0.1
    return dict(
        atom_emb1=s * jax.random.normal(ks[0], (NUM_ATOM_TYPE, EMB_DIM), jnp.float32),
        atom_emb2=s * jax.random.normal(ks[1], (NUM_CHIRALITY, EMB_DIM), jnp.float32),
        edge_emb1=s * jax.random.normal(ks[2], (NUM_LAYERS, NUM_BOND_TYPE, EMB_DIM), jnp.float32),
        edge_emb2=s * jax.random.normal(ks[3], (NUM_LAYERS, NUM_BOND_DIR, EMB_DIM), jnp.float32),
        w1=s * jax.random.normal(ks[4], (NUM_LAYERS, EMB_DIM, HID), jnp.float32),
        b1=jnp.zeros((NUM_LAYERS, HID), jnp.float32),
        w2=s * jax.random.normal(ks[5], (NUM_LAYERS, HID, EMB_DIM), jnp.float32),
        b2=jnp.zeros((NUM_LAYERS, EMB_DIM), jnp.float32),
        bn_gamma=jnp.ones((NUM_LAYERS, EMB_DIM), jnp.float32),
        bn_beta=jnp.zeros((NUM_LAYERS, EMB_DIM), jnp.float32),
        bn_mean=jnp.zeros((NUM_LAYERS, EMB_DIM), jnp.float32),
        bn_var=jnp.ones((NUM_LAYERS, EMB_DIM), jnp.float32),
        w_head=s * jax.random.normal(ks[6], (EMB_DIM, NUM_TASKS), jnp.float32),
        b_head=jnp.zeros((1, NUM_TASKS), jnp.float32),
    )


def fold_and_pack_params(p):
    """Fold eval-mode BatchNorm into w2/b2 (exact), pack matmul weights into a bf16 slab
    and biases + head into an exact f32 slab."""
    D = EMB_DIM
    scale = p["bn_gamma"] * jax.lax.rsqrt(p["bn_var"] + BN_EPS)          # [L, D]
    w2f = p["w2"] * scale[:, None, :]                                    # [L, 2D, D]
    b2f = (p["b2"] - p["bn_mean"]) * scale + p["bn_beta"]                # [L, D]

    wmat = jnp.zeros((NUM_LAYERS, WMAT_ROWS, HID), jnp.float32)
    wmat = wmat.at[:, :D, :].set(p["w1"])
    wmat = wmat.at[:, D:3 * D, :D].set(w2f)

    wsmall = jnp.zeros((WSMALL_ROWS, HID), jnp.float32)
    wsmall = wsmall.at[:NUM_LAYERS, :].set(p["b1"])
    wsmall = wsmall.at[4:4 + NUM_LAYERS, :D].set(b2f)
    wsmall = wsmall.at[7, :NUM_TASKS].set(p["b_head"][0])
    wsmall = wsmall.at[8:8 + D, :NUM_TASKS].set(p["w_head"])
    return wmat.astype(jnp.bfloat16), wsmall


def densify_one_batch(params, x, edge_index, edge_attr, batch_assignments):
    """Densify one block-diagonally packed super-graph of GRAPHS_PER_BATCH graphs."""
    src, dst = edge_index[0], edge_index[1]

    # initial node embeddings: sum of two atom-feature embedding lookups
    h0 = params["atom_emb1"][x[:, 0]] + params["atom_emb2"][x[:, 1]]          # [N, D]

    # dense (block-diagonal) adjacency incl. GIN self-loops; edges counted with multiplicity
    A = jnp.zeros((N_NODES, N_NODES), jnp.float32).at[dst, src].add(1.0)
    A = A + jnp.eye(N_NODES, dtype=jnp.float32)

    # per-layer aggregated edge embeddings (self-loop edge_attr = [4, 0])
    eaggs = []
    for l in range(NUM_LAYERS):
        ee = params["edge_emb1"][l][edge_attr[:, 0]] + params["edge_emb2"][l][edge_attr[:, 1]]
        eagg = jnp.zeros((N_NODES, EMB_DIM), jnp.float32).at[dst].add(ee)
        self_ee = params["edge_emb1"][l][4] + params["edge_emb2"][l][0]
        eaggs.append(eagg + self_ee[None, :])
    hx = jnp.concatenate([h0[None], jnp.stack(eaggs, axis=0)], axis=0)        # [L+1, N, D]

    # mean-pool matrix (exact 1/count weights, kept f32)
    counts = jnp.zeros((GRAPHS_PER_BATCH,), jnp.float32).at[batch_assignments].add(1.0)
    onehot = (jnp.arange(GRAPHS_PER_BATCH)[:, None] == batch_assignments[None, :]).astype(jnp.float32)
    pool_mat = onehot / jnp.maximum(counts, 1.0)[:, None]                     # [B, N]

    # bf16 MXU feed (A is 0/1/2 -> exact in bf16); pool kept f32 for exact means
    return hx.astype(jnp.bfloat16), A.astype(jnp.bfloat16), pool_mat


if __name__ == "__main__":
    key = jax.random.PRNGKey(0)
    kp, kd = jax.random.split(key)

    params = init_params(kp)
    wmat, wsmall = fold_and_pack_params(params)

    # node -> graph assignment (block-diagonal: graph g owns nodes [g*16, (g+1)*16))
    graph_of_node = jnp.repeat(jnp.arange(GRAPHS_PER_BATCH, dtype=jnp.int32), NODES_PER_GRAPH)
    edge_graph = jnp.repeat(jnp.arange(GRAPHS_PER_BATCH, dtype=jnp.int32), EDGES_PER_GRAPH)

    hx_list, A_list, pool_list = [], [], []
    for b in range(NUM_BATCHES):
        kb = jax.random.fold_in(kd, b)
        k1, k2, k3, k4, k5 = jax.random.split(kb, 5)
        # synthetic molecular graphs, packed block-diagonally per batch
        x = jnp.stack(
            [jax.random.randint(k1, (N_NODES,), 0, NUM_ATOM_TYPE),
             jax.random.randint(k2, (N_NODES,), 0, NUM_CHIRALITY)], axis=1).astype(jnp.int32)
        local = jax.random.randint(k3, (2, N_EDGES), 0, NODES_PER_GRAPH)
        edge_index = (local + edge_graph[None, :] * NODES_PER_GRAPH).astype(jnp.int32)
        edge_attr = jnp.stack(
            [jax.random.randint(k4, (N_EDGES,), 0, 4),       # bond types 0..3 (4 = self-loop)
             jax.random.randint(k5, (N_EDGES,), 0, NUM_BOND_DIR)], axis=1).astype(jnp.int32)

        hx_b, A_b, pool_b = densify_one_batch(params, x, edge_index, edge_attr, graph_of_node)
        hx_list.append(hx_b)
        A_list.append(A_b)
        pool_list.append(pool_b)

    hx = jnp.stack(hx_list)        # [NB, L+1, N, D] bf16
    A = jnp.stack(A_list)          # [NB, N, N]      bf16
    pool = jnp.stack(pool_list)    # [NB, B, N]      f32

    out = graphpred_forward(wmat, wsmall, hx, A, pool)
    out = jax.block_until_ready(out)
    assert out.shape == (NUM_BATCHES, GRAPHS_PER_BATCH, NUM_TASKS)
    print("KERNEL_OK")
</pallas_src>

<mosaic_0001>
module attributes {stable_mosaic.version = 11 : i64} {
  func.func @graphpred_kernel(%arg0: i32, %arg1: memref<3x96x64xbf16, #tpu.memory_space<vmem>>, %arg2: memref<40x64xf32, #tpu.memory_space<vmem>>, %arg3: memref<1x4x128x32xbf16, #tpu.memory_space<vmem>>, %arg4: memref<1x128x128xbf16, #tpu.memory_space<vmem>>, %arg5: memref<1x8x128xf32, #tpu.memory_space<vmem>>, %arg6: memref<1x8x4xf32, #tpu.memory_space<vmem>>) attributes {dimension_semantics = [#tpu.dimension_semantics<parallel>], iteration_bounds = array<i64: 2>, scalar_prefetch = 0 : i64, scratch_operands = 0 : i64, tpu.core_type = #tpu.core_type<tc>, window_params = [{pipeline_mode = #tpu.pipeline_mode<synchronous>, transform_indices = @transform_0, window_bounds = array<i64: 3, 96, 64>}, {pipeline_mode = #tpu.pipeline_mode<synchronous>, transform_indices = @transform_1, window_bounds = array<i64: 40, 64>}, {transform_indices = @transform_2, window_bounds = array<i64: 1, 4, 128, 32>}, {transform_indices = @transform_3, window_bounds = array<i64: 1, 128, 128>}, {transform_indices = @transform_4, window_bounds = array<i64: 1, 8, 128>}, {transform_indices = @transform_5, window_bounds = array<i64: 1, 8, 4>}]} {
    %c0 = arith.constant 0 : index
    %c0_0 = arith.constant 0 : index
    %c0_1 = arith.constant 0 : index
    %0 = vector.load %arg4[%c0, %c0_0, %c0_1] : memref<1x128x128xbf16, #tpu.memory_space<vmem>>, vector<1x128x128xbf16>
    %1 = vector.shape_cast %0 : vector<1x128x128xbf16> to vector<128x128xbf16>
    %c0_2 = arith.constant 0 : index
    %c0_3 = arith.constant 0 : index
    %2 = vector.load %arg2[%c0_2, %c0_3] : memref<40x64xf32, #tpu.memory_space<vmem>>, vector<40x64xf32>
    %c0_4 = arith.constant 0 : index
    %c0_5 = arith.constant 0 : index
    %c0_6 = arith.constant 0 : index
    %c0_7 = arith.constant 0 : index
    %3 = vector.load %arg3[%c0_4, %c0_5, %c0_6, %c0_7] : memref<1x4x128x32xbf16, #tpu.memory_space<vmem>>, vector<1x1x128x32xbf16>
    %4 = vector.shape_cast %3 : vector<1x1x128x32xbf16> to vector<128x32xbf16>
    %c0_8 = arith.constant 0 : index
    %c0_9 = arith.constant 0 : index
    %c0_10 = arith.constant 0 : index
    %5 = vector.load %arg1[%c0_8, %c0_9, %c0_10] : memref<3x96x64xbf16, #tpu.memory_space<vmem>>, vector<1x96x64xbf16>
    %6 = vector.shape_cast %5 : vector<1x96x64xbf16> to vector<96x64xbf16>
    %7 = vector.extract_strided_slice %6 {offsets = [0, 0], sizes = [32, 64], strides = [1, 1]} : vector<96x64xbf16> to vector<32x64xbf16>
    %8 = vector.extract_strided_slice %6 {offsets = [32, 0], sizes = [64, 32], strides = [1, 1]} : vector<96x64xbf16> to vector<64x32xbf16>
    %9 = vector.extract_strided_slice %2 {offsets = [0, 0], sizes = [1, 64], strides = [1, 1]} : vector<40x64xf32> to vector<1x64xf32>
    %10 = vector.extract_strided_slice %2 {offsets = [4, 0], sizes = [1, 32], strides = [1, 1]} : vector<40x64xf32> to vector<1x32xf32>
    %cst = arith.constant dense<0.000000e+00> : vector<128x32xf32>
    %11 = tpu.matmul %1, %4, %cst {dimension_numbers = #tpu.dot_dimension_numbers<[1], [0], [0], [1], [0, 0, 1, 1], [], []>} : vector<128x128xbf16>, vector<128x32xbf16>, vector<128x32xf32> -> vector<128x32xf32>
    %c0_11 = arith.constant 0 : index
    %c1 = arith.constant 1 : index
    %c0_12 = arith.constant 0 : index
    %c0_13 = arith.constant 0 : index
    %12 = vector.load %arg3[%c0_11, %c1, %c0_12, %c0_13] : memref<1x4x128x32xbf16, #tpu.memory_space<vmem>>, vector<1x1x128x32xbf16>
    %13 = vector.shape_cast %12 : vector<1x1x128x32xbf16> to vector<128x32xbf16>
    %14 = arith.extf %13 : vector<128x32xbf16> to vector<128x32xf32>
    %15 = arith.addf %11, %14 : vector<128x32xf32>
    %16 = arith.truncf %15 : vector<128x32xf32> to vector<128x32xbf16>
    %cst_14 = arith.constant dense<0.000000e+00> : vector<128x64xf32>
    %17 = tpu.matmul %16, %7, %cst_14 {dimension_numbers = #tpu.dot_dimension_numbers<[1], [0], [0], [1], [0, 0, 1, 1], [], []>} : vector<128x32xbf16>, vector<32x64xbf16>, vector<128x64xf32> -> vector<128x64xf32>
    %18 = vector.broadcast %9 : vector<1x64xf32> to vector<128x64xf32>
    %19 = arith.addf %17, %18 : vector<128x64xf32>
    %cst_15 = arith.constant 0.000000e+00 : f32
    %20 = vector.broadcast %cst_15 : f32 to vector<128x64xf32>
    %21 = arith.maximumf %19, %20 : vector<128x64xf32>
    %22 = arith.truncf %21 : vector<128x64xf32> to vector<128x64xbf16>
    %cst_16 = arith.constant dense<0.000000e+00> : vector<128x32xf32>
    %23 = tpu.matmul %22, %8, %cst_16 {dimension_numbers = #tpu.dot_dimension_numbers<[1], [0], [0], [1], [0, 0, 1, 1], [], []>} : vector<128x64xbf16>, vector<64x32xbf16>, vector<128x32xf32> -> vector<128x32xf32>
    %24 = vector.broadcast %10 : vector<1x32xf32> to vector<128x32xf32>
    %25 = arith.addf %23, %24 : vector<128x32xf32>
    %cst_17 = arith.constant 0.000000e+00 : f32
    %26 = vector.broadcast %cst_17 : f32 to vector<128x32xf32>
    %27 = arith.maximumf %25, %26 : vector<128x32xf32>
    %28 = arith.truncf %27 : vector<128x32xf32> to vector<128x32xbf16>
    %c1_18 = arith.constant 1 : index
    %c0_19 = arith.constant 0 : index
    %c0_20 = arith.constant 0 : index
    %29 = vector.load %arg1[%c1_18, %c0_19, %c0_20] : memref<3x96x64xbf16, #tpu.memory_space<vmem>>, vector<1x96x64xbf16>
    %30 = vector.shape_cast %29 : vector<1x96x64xbf16> to vector<96x64xbf16>
    %31 = vector.extract_strided_slice %30 {offsets = [0, 0], sizes = [32, 64], strides = [1, 1]} : vector<96x64xbf16> to vector<32x64xbf16>
    %32 = vector.extract_strided_slice %30 {offsets = [32, 0], sizes = [64, 32], strides = [1, 1]} : vector<96x64xbf16> to vector<64x32xbf16>
    %33 = vector.extract_strided_slice %2 {offsets = [1, 0], sizes = [1, 64], strides = [1, 1]} : vector<40x64xf32> to vector<1x64xf32>
    %34 = vector.extract_strided_slice %2 {offsets = [5, 0], sizes = [1, 32], strides = [1, 1]} : vector<40x64xf32> to vector<1x32xf32>
    %cst_21 = arith.constant dense<0.000000e+00> : vector<128x32xf32>
    %35 = tpu.matmul %1, %28, %cst_21 {dimension_numbers = #tpu.dot_dimension_numbers<[1], [0], [0], [1], [0, 0, 1, 1], [], []>} : vector<128x128xbf16>, vector<128x32xbf16>, vector<128x32xf32> -> vector<128x32xf32>
    %c0_22 = arith.constant 0 : index
    %c2 = arith.constant 2 : index
    %c0_23 = arith.constant 0 : index
    %c0_24 = arith.constant 0 : index
    %36 = vector.load %arg3[%c0_22, %c2, %c0_23, %c0_24] : memref<1x4x128x32xbf16, #tpu.memory_space<vmem>>, vector<1x1x128x32xbf16>
    %37 = vector.shape_cast %36 : vector<1x1x128x32xbf16> to vector<128x32xbf16>
    %38 = arith.extf %37 : vector<128x32xbf16> to vector<128x32xf32>
    %39 = arith.addf %35, %38 : vector<128x32xf32>
    %40 = arith.truncf %39 : vector<128x32xf32> to vector<128x32xbf16>
    %cst_25 = arith.constant dense<0.000000e+00> : vector<128x64xf32>
    %41 = tpu.matmul %40, %31, %cst_25 {dimension_numbers = #tpu.dot_dimension_numbers<[1], [0], [0], [1], [0, 0, 1, 1], [], []>} : vector<128x32xbf16>, vector<32x64xbf16>, vector<128x64xf32> -> vector<128x64xf32>
    %42 = vector.broadcast %33 : vector<1x64xf32> to vector<128x64xf32>
    %43 = arith.addf %41, %42 : vector<128x64xf32>
    %cst_26 = arith.constant 0.000000e+00 : f32
    %44 = vector.broadcast %cst_26 : f32 to vector<128x64xf32>
    %45 = arith.maximumf %43, %44 : vector<128x64xf32>
    %46 = arith.truncf %45 : vector<128x64xf32> to vector<128x64xbf16>
    %cst_27 = arith.constant dense<0.000000e+00> : vector<128x32xf32>
    %47 = tpu.matmul %46, %32, %cst_27 {dimension_numbers = #tpu.dot_dimension_numbers<[1], [0], [0], [1], [0, 0, 1, 1], [], []>} : vector<128x64xbf16>, vector<64x32xbf16>, vector<128x32xf32> -> vector<128x32xf32>
    %48 = vector.broadcast %34 : vector<1x32xf32> to vector<128x32xf32>
    %49 = arith.addf %47, %48 : vector<128x32xf32>
    %cst_28 = arith.constant 0.000000e+00 : f32
    %50 = vector.broadcast %cst_28 : f32 to vector<128x32xf32>
    %51 = arith.maximumf %49, %50 : vector<128x32xf32>
    %52 = arith.truncf %51 : vector<128x32xf32> to vector<128x32xbf16>
    %c2_29 = arith.constant 2 : index
    %c0_30 = arith.constant 0 : index
    %c0_31 = arith.constant 0 : index
    %53 = vector.load %arg1[%c2_29, %c0_30, %c0_31] : memref<3x96x64xbf16, #tpu.memory_space<vmem>>, vector<1x96x64xbf16>
    %54 = vector.shape_cast %53 : vector<1x96x64xbf16> to vector<96x64xbf16>
    %55 = vector.extract_strided_slice %54 {offsets = [0, 0], sizes = [32, 64], strides = [1, 1]} : vector<96x64xbf16> to vector<32x64xbf16>
    %56 = vector.extract_strided_slice %54 {offsets = [32, 0], sizes = [64, 32], strides = [1, 1]} : vector<96x64xbf16> to vector<64x32xbf16>
    %57 = vector.extract_strided_slice %2 {offsets = [2, 0], sizes = [1, 64], strides = [1, 1]} : vector<40x64xf32> to vector<1x64xf32>
    %58 = vector.extract_strided_slice %2 {offsets = [6, 0], sizes = [1, 32], strides = [1, 1]} : vector<40x64xf32> to vector<1x32xf32>
    %cst_32 = arith.constant dense<0.000000e+00> : vector<128x32xf32>
    %59 = tpu.matmul %1, %52, %cst_32 {dimension_numbers = #tpu.dot_dimension_numbers<[1], [0], [0], [1], [0, 0, 1, 1], [], []>} : vector<128x128xbf16>, vector<128x32xbf16>, vector<128x32xf32> -> vector<128x32xf32>
    %c0_33 = arith.constant 0 : index
    %c3 = arith.constant 3 : index
    %c0_34 = arith.constant 0 : index
    %c0_35 = arith.constant 0 : index
    %60 = vector.load %arg3[%c0_33, %c3, %c0_34, %c0_35] : memref<1x4x128x32xbf16, #tpu.memory_space<vmem>>, vector<1x1x128x32xbf16>
    %61 = vector.shape_cast %60 : vector<1x1x128x32xbf16> to vector<128x32xbf16>
    %62 = arith.extf %61 : vector<128x32xbf16> to vector<128x32xf32>
    %63 = arith.addf %59, %62 : vector<128x32xf32>
    %64 = arith.truncf %63 : vector<128x32xf32> to vector<128x32xbf16>
    %cst_36 = arith.constant dense<0.000000e+00> : vector<128x64xf32>
    %65 = tpu.matmul %64, %55, %cst_36 {dimension_numbers = #tpu.dot_dimension_numbers<[1], [0], [0], [1], [0, 0, 1, 1], [], []>} : vector<128x32xbf16>, vector<32x64xbf16>, vector<128x64xf32> -> vector<128x64xf32>
    %66 = vector.broadcast %57 : vector<1x64xf32> to vector<128x64xf32>
    %67 = arith.addf %65, %66 : vector<128x64xf32>
    %cst_37 = arith.constant 0.000000e+00 : f32
    %68 = vector.broadcast %cst_37 : f32 to vector<128x64xf32>
    %69 = arith.maximumf %67, %68 : vector<128x64xf32>
    %70 = arith.truncf %69 : vector<128x64xf32> to vector<128x64xbf16>
    %cst_38 = arith.constant dense<0.000000e+00> : vector<128x32xf32>
    %71 = tpu.matmul %70, %56, %cst_38 {dimension_numbers = #tpu.dot_dimension_numbers<[1], [0], [0], [1], [0, 0, 1, 1], [], []>} : vector<128x64xbf16>, vector<64x32xbf16>, vector<128x32xf32> -> vector<128x32xf32>
    %72 = vector.broadcast %58 : vector<1x32xf32> to vector<128x32xf32>
    %73 = arith.addf %71, %72 : vector<128x32xf32>
    %c0_39 = arith.constant 0 : index
    %c0_40 = arith.constant 0 : index
    %c0_41 = arith.constant 0 : index
    %74 = vector.load %arg5[%c0_39, %c0_40, %c0_41] : memref<1x8x128xf32, #tpu.memory_space<vmem>>, vector<1x8x128xf32>
    %75 = vector.shape_cast %74 : vector<1x8x128xf32> to vector<8x128xf32>
    %cst_42 = arith.constant dense<0.000000e+00> : vector<8x32xf32>
    %76 = tpu.matmul %75, %73, %cst_42 {dimension_numbers = #tpu.dot_dimension_numbers<[1], [0], [0], [1], [0, 0, 1, 1], [], []>} : vector<8x128xf32>, vector<128x32xf32>, vector<8x32xf32> -> vector<8x32xf32>
    %77 = vector.extract_strided_slice %2 {offsets = [8, 0], sizes = [32, 4], strides = [1, 1]} : vector<40x64xf32> to vector<32x4xf32>
    %78 = vector.extract_strided_slice %2 {offsets = [7, 0], sizes = [1, 4], strides = [1, 1]} : vector<40x64xf32> to vector<1x4xf32>
    %cst_43 = arith.constant dense<0.000000e+00> : vector<8x4xf32>
    %79 = tpu.matmul %76, %77, %cst_43 {dimension_numbers = #tpu.dot_dimension_numbers<[1], [0], [0], [1], [0, 0, 1, 1], [], []>} : vector<8x32xf32>, vector<32x4xf32>, vector<8x4xf32> -> vector<8x4xf32>
    %80 = vector.broadcast %78 : vector<1x4xf32> to vector<8x4xf32>
    %81 = arith.addf %79, %80 : vector<8x4xf32>
    %c0_44 = arith.constant 0 : index
    %c0_45 = arith.constant 0 : index
    %c0_46 = arith.constant 0 : index
    %82 = vector.load %arg6[%c0_44, %c0_45, %c0_46] : memref<1x8x4xf32, #tpu.memory_space<vmem>>, vector<1x8x4xf32>
    %83 = vector.shape_cast %82 : vector<1x8x4xf32> to vector<8x4xf32>
    %84 = vector.shape_cast %81 : vector<8x4xf32> to vector<1x8x4xf32>
    tpu.vector_store %arg6[%c0_44, %c0_45, %c0_46], %84 {strides = array<i32>} : memref<1x8x4xf32, #tpu.memory_space<vmem>>, vector<1x8x4xf32>,
    return
  }
  func.func @transform_0(%arg0: i32) -> (i32, i32, i32) {
    %c0_i32 = arith.constant 0 : i32
    %c0_i32_0 = arith.constant 0 : i32
    %c0_i32_1 = arith.constant 0 : i32
    %c0_i32_2 = arith.constant 0 : i32
    return %c0_i32, %c0_i32_0, %c0_i32_1 : i32, i32, i32
  }
  func.func @transform_1(%arg0: i32) -> (i32, i32) {
    %c0_i32 = arith.constant 0 : i32
    %c0_i32_0 = arith.constant 0 : i32
    %c0_i32_1 = arith.constant 0 : i32
    return %c0_i32, %c0_i32_0 : i32, i32
  }
  func.func @transform_2(%arg0: i32) -> (i32, i32, i32, i32) {
    %c0_i32 = arith.constant 0 : i32
    %c0_i32_0 = arith.constant 0 : i32
    %c0_i32_1 = arith.constant 0 : i32
    %c0_i32_2 = arith.constant 0 : i32
    return %arg0, %c0_i32, %c0_i32_0, %c0_i32_1 : i32, i32, i32, i32
  }
  func.func @transform_3(%arg0: i32) -> (i32, i32, i32) {
    %c0_i32 = arith.constant 0 : i32
    %c0_i32_0 = arith.constant 0 : i32
    %c0_i32_1 = arith.constant 0 : i32
    return %arg0, %c0_i32, %c0_i32_0 : i32, i32, i32
  }
  func.func @transform_4(%arg0: i32) -> (i32, i32, i32) {
    %c0_i32 = arith.constant 0 : i32
    %c0_i32_0 = arith.constant 0 : i32
    %c0_i32_1 = arith.constant 0 : i32
    return %arg0, %c0_i32, %c0_i32_0 : i32, i32, i32
  }
  func.func @transform_5(%arg0: i32) -> (i32, i32, i32) {
    %c0_i32 = arith.constant 0 : i32
    %c0_i32_0 = arith.constant 0 : i32
    %c0_i32_1 = arith.constant 0 : i32
    return %arg0, %c0_i32, %c0_i32_0 : i32, i32, i32
  }
}

</mosaic_0001>

<llo_original>
// kernel: tpu_custom_call.1
$region0: #{tpu_custom_call.1}
  #allocation0 [shape = 'u32[]', space=smem, size = 0x4, offset = 0x4, fixed_abs, tag = 'smem constant byte address 0x4 - core index']
  #allocation1 [shape = 'u32[144,128]{1,0:T(1,128)}', space=vmem, size = 0x12000, scoped, tag = 'internal scratch']
  %s0 = inlined_call_operand.vmem [shape: bf16[3,96,64], index: 0, kind: input, shape index: {}]
  %s1 = inlined_call_operand.vmem [shape: f32[40,64], index: 1, kind: input, shape index: {}]
  %s2 = inlined_call_operand.vmem [shape: bf16[2,4,128,32], index: 2, kind: input, shape index: {}]
  %s3 = inlined_call_operand.vmem [shape: bf16[2,128,128], index: 3, kind: input, shape index: {}]
  %s4 = inlined_call_operand.vmem [shape: f32[2,8,128], index: 4, kind: input, shape index: {}]
  %s5 = inlined_call_operand.vmem [shape: f32[2,8,4], index: 5, kind: output, shape index: {}]
  %s6 = sld [smem:[#allocation0]]
  $region53: #{tpu_custom_call.1} parent=0
    _
  %s8 = ssub.s32 1, %s6
  %s9 = scalar_select 0, %s8, %s6
  loop: start=0, step=1, limit=4
  $region2: #{tpu_custom_call.1} parent=0 // loop_pre_header
    _
  $region3: #{tpu_custom_call.1} parent=0 // loop_header
    %s11 = sphi 0, %s15
    %p12 = scmp.ge.s32.totalorder %s11, 4
    %s19 = sphi 0, %s19
    %s21 = sphi 0, %s19
    %s22 = sphi 0, %s21
    %s36 = sphi 0, %s22
    %s40 = sphi 0, %s40
    %s42 = sphi 0, %s40
    %s43 = sphi 0, %s42
    %s57 = sphi 0, %s43
    %s63 = sphi 0, %s65
    %s66 = sphi 0, %s63
    %s67 = sphi 0, %s66
    %s83 = sphi 0, %s67
    %s89 = sphi 0, %s91
    %s92 = sphi 0, %s89
    %s93 = sphi 0, %s92
    %s109 = sphi 0, %s93
    %s115 = sphi 0, %s117
    %s118 = sphi 0, %s115
    %s119 = sphi 0, %s118
    %s135 = sphi 0, %s119
    %s141 = sphi 0, %s143
    %s144 = sphi 0, %s141
    %s145 = sphi 0, %s144
    %s161 = sphi 0, %s145
  $region4: #{tpu_custom_call.1} parent=0 // loop_header_branch
    %14 = sbr.rel (%p12) target = $region8
  $region5: #{tpu_custom_call.1} parent=0 // loop_body
    %s16 = ssub.s32 %s11, 1
    %s17 = ssub.s32 %s11, 2
    %s18 = sadd.s32 %s11, 1
    %s20 = sadd.s32 %s19, 1
    %p23 = scmp.eq.s32.totalorder %s11, 1
    %p24 = scmp.ne.s32.totalorder %s19, %s21
    %p25 = scmp.eq.s32.totalorder %s11, 0
    %p26 = por %p24, %p25
    %p27 = scmp.ne.s32.totalorder %s19, %s21
    %p28 = scmp.eq.s32.totalorder %s16, 1
    %p29 = por %p27, %p28
    %p30 = scmp.ne.s32.totalorder %s21, %s22
    %p31 = scmp.eq.s32.totalorder %s16, 0
    %p32 = por %p30, %p31
    %p33 = scmp.ne.s32.totalorder %s21, %s22
    %p34 = scmp.eq.s32.totalorder %s17, 1
    %p35 = por %p33, %p34
    %p37 = scmp.ne.s32.totalorder %s22, %s36
    %p38 = scmp.eq.s32.totalorder %s17, 0
    %p39 = por %p37, %p38
    %s41 = sadd.s32 %s40, 1
    %p44 = scmp.eq.s32.totalorder %s11, 1
    %p45 = scmp.ne.s32.totalorder %s40, %s42
    %p46 = scmp.eq.s32.totalorder %s11, 0
    %p47 = por %p45, %p46
    %p48 = scmp.ne.s32.totalorder %s40, %s42
    %p49 = scmp.eq.s32.totalorder %s16, 1
    %p50 = por %p48, %p49
    %p51 = scmp.ne.s32.totalorder %s42, %s43
    %p52 = scmp.eq.s32.totalorder %s16, 0
    %p53 = por %p51, %p52
    %p54 = scmp.ne.s32.totalorder %s42, %s43
    %p55 = scmp.eq.s32.totalorder %s17, 1
    %p56 = por %p54, %p55
    %p58 = scmp.ne.s32.totalorder %s43, %s57
    %p59 = scmp.eq.s32.totalorder %s17, 0
    %p60 = por %p58, %p59
    %s61 = ssub.s32 %s11, %s18
    %p62 = scmp.eq.s32.totalorder %s61, 0
    %s64 = sadd.s32 %s63, 1
    %s65 = scalar_select %p62, %s63, %s64
    %p68 = pneg %p62
    %p69 = scmp.eq.s32.totalorder %s11, 1
    %p70 = por %p68, %p69
    %p71 = scmp.ne.s32.totalorder %s63, %s66
    %p72 = scmp.eq.s32.totalorder %s11, 0
    %p73 = por %p71, %p72
    %p74 = scmp.ne.s32.totalorder %s63, %s66
    %p75 = scmp.eq.s32.totalorder %s16, 1
    %p76 = por %p74, %p75
    %p77 = scmp.ne.s32.totalorder %s66, %s67
    %p78 = scmp.eq.s32.totalorder %s16, 0
    %p79 = por %p77, %p78
    %p80 = scmp.ne.s32.totalorder %s66, %s67
    %p81 = scmp.eq.s32.totalorder %s17, 1
    %p82 = por %p80, %p81
    %p84 = scmp.ne.s32.totalorder %s67, %s83
    %p85 = scmp.eq.s32.totalorder %s17, 0
    %p86 = por %p84, %p85
    %s87 = ssub.s32 %s11, %s18
    %p88 = scmp.eq.s32.totalorder %s87, 0
    %s90 = sadd.s32 %s89, 1
    %s91 = scalar_select %p88, %s89, %s90
    %p94 = pneg %p88
    %p95 = scmp.eq.s32.totalorder %s11, 1
    %p96 = por %p94, %p95
    %p97 = scmp.ne.s32.totalorder %s89, %s92
    %p98 = scmp.eq.s32.totalorder %s11, 0
    %p99 = por %p97, %p98
    %p100 = scmp.ne.s32.totalorder %s89, %s92
    %p101 = scmp.eq.s32.totalorder %s16, 1
    %p102 = por %p100, %p101
    %p103 = scmp.ne.s32.totalorder %s92, %s93
    %p104 = scmp.eq.s32.totalorder %s16, 0
    %p105 = por %p103, %p104
    %p106 = scmp.ne.s32.totalorder %s92, %s93
    %p107 = scmp.eq.s32.totalorder %s17, 1
    %p108 = por %p106, %p107
    %p110 = scmp.ne.s32.totalorder %s93, %s109
    %p111 = scmp.eq.s32.totalorder %s17, 0
    %p112 = por %p110, %p111
    %s113 = ssub.s32 %s11, %s18
    %p114 = scmp.eq.s32.totalorder %s113, 0
    %s116 = sadd.s32 %s115, 1
    %s117 = scalar_select %p114, %s115, %s116
    %p120 = pneg %p114
    %p121 = scmp.eq.s32.totalorder %s11, 1
    %p122 = por %p120, %p121
    %p123 = scmp.ne.s32.totalorder %s115, %s118
    %p124 = scmp.eq.s32.totalorder %s11, 0
    %p125 = por %p123, %p124
    %p126 = scmp.ne.s32.totalorder %s115, %s118
    %p127 = scmp.eq.s32.totalorder %s16, 1
    %p128 = por %p126, %p127
    %p129 = scmp.ne.s32.totalorder %s118, %s119
    %p130 = scmp.eq.s32.totalorder %s16, 0
    %p131 = por %p129, %p130
    %p132 = scmp.ne.s32.totalorder %s118, %s119
    %p133 = scmp.eq.s32.totalorder %s17, 1
    %p134 = por %p132, %p133
    %p136 = scmp.ne.s32.totalorder %s119, %s135
    %p137 = scmp.eq.s32.totalorder %s17, 0
    %p138 = por %p136, %p137
    %s139 = ssub.s32 %s11, %s18
    %p140 = scmp.eq.s32.totalorder %s139, 0
    %s142 = sadd.s32 %s141, 1
    %s143 = scalar_select %p140, %s141, %s142
    %p146 = pneg %p140
    %p147 = scmp.eq.s32.totalorder %s11, 1
    %p148 = por %p146, %p147
    %p149 = scmp.ne.s32.totalorder %s141, %s144
    %p150 = scmp.eq.s32.totalorder %s11, 0
    %p151 = por %p149, %p150
    %p152 = scmp.ne.s32.totalorder %s141, %s144
    %p153 = scmp.eq.s32.totalorder %s16, 1
    %p154 = por %p152, %p153
    %p155 = scmp.ne.s32.totalorder %s144, %s145
    %p156 = scmp.eq.s32.totalorder %s16, 0
    %p157 = por %p155, %p156
    %p158 = scmp.ne.s32.totalorder %s144, %s145
    %p159 = scmp.eq.s32.totalorder %s17, 1
    %p160 = por %p158, %p159
    %p162 = scmp.ne.s32.totalorder %s145, %s161
    %p163 = scmp.eq.s32.totalorder %s17, 0
    %p164 = por %p162, %p163
    %p165 = scmp.le.s32.totalorder 1, %s11
    %p166 = scmp.lt.s32.totalorder %s11, 3
    %p167 = pnand %p165, %p166
    %p168 = pneg %p167
    // Predicated region
    $region9: #{tpu_custom_call.1} parent=5 // pred_check
      _
    $region10: #{tpu_custom_call.1} parent=5 // pred_check_branch
      %170 = sbr.rel (%p167) target = $region12
    $region11: #{tpu_custom_call.1} parent=5 // pred_region
      %s171 = ssub.s32 %s11, 1
      // Predicated region
      $region13: #{tpu_custom_call.1} parent=11 // pred_check
        %p172 = pneg %p32
      $region14: #{tpu_custom_call.1} parent=11 // pred_check_branch
        %174 = sbr.rel (%p172) target = $region16
      $region15: #{tpu_custom_call.1} parent=11 // pred_region
        _
      $region16: #{tpu_custom_call.1} parent=11 // pred_fallthru
        _
      // Predicated region
      $region17: #{tpu_custom_call.1} parent=11 // pred_check
        %p175 = pneg %p53
      $region18: #{tpu_custom_call.1} parent=11 // pred_check_branch
        %177 = sbr.rel (%p175) target = $region20
      $region19: #{tpu_custom_call.1} parent=11 // pred_region
        _
      $region20: #{tpu_custom_call.1} parent=11 // pred_fallthru
        _
    $region12: #{tpu_custom_call.1} parent=5 // pred_fallthru
      _
    %p178 = scmp.lt.s32.totalorder %s11, 2
    // Predicated region
    $region21: #{tpu_custom_call.1} parent=5 // pred_check
      %p179 = pneg %p178
    $region22: #{tpu_custom_call.1} parent=5 // pred_check_branch
      %181 = sbr.rel (%p179) target = $region24
    $region23: #{tpu_custom_call.1} parent=5 // pred_region
      // Predicated region
      $region25: #{tpu_custom_call.1} parent=23 // pred_check
        %p182 = pneg %p73
      $region26: #{tpu_custom_call.1} parent=23 // pred_check_branch
        %184 = sbr.rel (%p182) target = $region28
      $region27: #{tpu_custom_call.1} parent=23 // pred_region
        %p185 = scmp.lt.s32.totalorder %s11, 1
        %s186 = scalar_select %p185, %s11, 1
        %s187 = smul.addr %s186, 64
        %s188 = smul.addr %s187, 4
        %s189 = scalar_lea.vmem %s2, %s188
      $region28: #{tpu_custom_call.1} parent=23 // pred_fallthru
        _
      // Predicated region
      $region29: #{tpu_custom_call.1} parent=23 // pred_check
        %p190 = pneg %p99
      $region30: #{tpu_custom_call.1} parent=23 // pred_check_branch
        %192 = sbr.rel (%p190) target = $region32
      $region31: #{tpu_custom_call.1} parent=23 // pred_region
        %p193 = scmp.lt.s32.totalorder %s11, 1
        %s194 = scalar_select %p193, %s11, 1
        %s195 = smul.addr %s194, 16
        %s196 = smul.addr %s195, 4
        %s197 = scalar_lea.vmem %s3, %s196
      $region32: #{tpu_custom_call.1} parent=23 // pred_fallthru
        _
      // Predicated region
      $region33: #{tpu_custom_call.1} parent=23 // pred_check
        %p198 = pneg %p125
      $region34: #{tpu_custom_call.1} parent=23 // pred_check_branch
        %200 = sbr.rel (%p198) target = $region36
      $region35: #{tpu_custom_call.1} parent=23 // pred_region
        %p201 = scmp.lt.s32.totalorder %s11, 1
        %s202 = scalar_select %p201, %s11, 1
        %s203 = smul.addr %s202, 8
        %s204 = scalar_lea.vmem %s4, %s203
      $region36: #{tpu_custom_call.1} parent=23 // pred_fallthru
        _
    $region24: #{tpu_custom_call.1} parent=5 // pred_fallthru
      _
    %p205 = scmp.le.s32.totalorder 1, %s11
    %p206 = scmp.lt.s32.totalorder %s11, 3
    %p207 = pnand %p205, %p206
    %p208 = pneg %p207
    // Predicated region
    $region37: #{tpu_custom_call.1} parent=5 // pred_check
      _
    $region38: #{tpu_custom_call.1} parent=5 // pred_check_branch
      %210 = sbr.rel (%p207) target = $region40
    $region39: #{tpu_custom_call.1} parent=5 // pred_region
      %s211 = ssub.s32 %s11, 1
      %p212 = pneg %p32
      %p213 = pneg %p29
      %p214 = pneg %p53
      %p215 = pneg %p50
      %p216 = scmp.lt.s32.totalorder %s16, 1
      %s217 = scalar_select %p216, %s16, 1
      %s218 = smul.addr %s217, 64
      %s219 = smul.addr %s218, 4
      %s220 = scalar_lea.vmem %s2, %s219
      %p221 = pneg %p79
      %p222 = pneg %p76
      %p223 = scmp.lt.s32.totalorder %s16, 1
      %s224 = scalar_select %p223, %s16, 1
      %s225 = smul.addr %s224, 16
      %s226 = smul.addr %s225, 4
      %s227 = scalar_lea.vmem %s3, %s226
      %p228 = pneg %p105
      %p229 = pneg %p102
      %p230 = scmp.lt.s32.totalorder %s16, 1
      %s231 = scalar_select %p230, %s16, 1
      %s232 = smul.addr %s231, 8
      %s233 = scalar_lea.vmem %s4, %s232
      %p234 = pneg %p131
      %p235 = pneg %p128
      %p236 = pneg %p157
      %p237 = pneg %p154
      %p238 = scmp.lt.s32.totalorder %s16, 1
      %s239 = scalar_select %p238, %s16, 1
      %s240 = smul.addr %s239, 8
      %s241 = scalar_lea.vmem %s5, %s240
      %p242 = scmp.lt.s32.totalorder %s16, 1
      %s243 = scalar_select %p242, %s16, 1
      %s244 = smul.addr %s243, 64
      %s245 = smul.addr %s244, 4
      %s246 = scalar_lea.vmem %s2, %s245
      %p247 = scmp.lt.s32.totalorder %s16, 1
      %s248 = scalar_select %p247, %s16, 1
      %s249 = smul.addr %s248, 16
      %s250 = smul.addr %s249, 4
      %s251 = scalar_lea.vmem %s3, %s250
      %p252 = scmp.lt.s32.totalorder %s16, 1
      %s253 = scalar_select %p252, %s16, 1
      %s254 = smul.addr %s253, 8
      %s255 = scalar_lea.vmem %s4, %s254
      %p256 = scmp.lt.s32.totalorder %s16, 1
      %s257 = scalar_select %p256, %s16, 1
      %s258 = smul.addr %s257, 8
      %s259 = scalar_lea.vmem %s5, %s258
      %v261 = vld [vmem:[%s251] sm:$0xf]
      %v262 = vld [vmem:[%s251 + $0x4] sm:$0xf]
      %v263 = vld [vmem:[%s251 + $0x8] sm:$0xf]
      %v264 = vld [vmem:[%s251 + $0xc] sm:$0xf]
      %v265 = vld [vmem:[%s251 + $0x10] sm:$0xf]
      %v266 = vld [vmem:[%s251 + $0x14] sm:$0xf]
      %v267 = vld [vmem:[%s251 + $0x18] sm:$0xf]
      %v268 = vld [vmem:[%s251 + $0x1c] sm:$0xf]
      %v269 = vld [vmem:[%s251 + $0x20] sm:$0xf]
      %v270 = vld [vmem:[%s251 + $0x24] sm:$0xf]
      %v271 = vld [vmem:[%s251 + $0x28] sm:$0xf]
      %v272 = vld [vmem:[%s251 + $0x2c] sm:$0xf]
      %v273 = vld [vmem:[%s251 + $0x30] sm:$0xf]
      %v274 = vld [vmem:[%s251 + $0x34] sm:$0xf]
      %v275 = vld [vmem:[%s251 + $0x38] sm:$0xf]
      %v276 = vld [vmem:[%s251 + $0x3c] sm:$0xf]
      %v277 = vld [vmem:[%s1] sm:$0xff]
      %v278 = vld [vmem:[%s1 + $0x8] sm:$0xff]
      %v279 = vld [vmem:[%s1 + $0x10] sm:$0xff]
      %v280 = vld [vmem:[%s1 + $0x18] sm:$0xff]
      %v281 = vld [vmem:[%s1 + $0x20] sm:$0xff]
      %v282 = vld [vmem:[%s246] sm:$0xf]
      %v283 = vld [vmem:[%s246 + $0x4] sm:$0xf]
      %v284 = vld [vmem:[%s246 + $0x8] sm:$0xf]
      %v285 = vld [vmem:[%s246 + $0xc] sm:$0xf]
      %v286 = vld [vmem:[%s246 + $0x10] sm:$0xf]
      %v287 = vld [vmem:[%s246 + $0x14] sm:$0xf]
      %v288 = vld [vmem:[%s246 + $0x18] sm:$0xf]
      %v289 = vld [vmem:[%s246 + $0x1c] sm:$0xf]
      %v290 = vld [vmem:[%s246 + $0x20] sm:$0xf]
      %v291 = vld [vmem:[%s246 + $0x24] sm:$0xf]
      %v292 = vld [vmem:[%s246 + $0x28] sm:$0xf]
      %v293 = vld [vmem:[%s246 + $0x2c] sm:$0xf]
      %v294 = vld [vmem:[%s246 + $0x30] sm:$0xf]
      %v295 = vld [vmem:[%s246 + $0x34] sm:$0xf]
      %v296 = vld [vmem:[%s246 + $0x38] sm:$0xf]
      %v297 = vld [vmem:[%s246 + $0x3c] sm:$0xf]
      %v298 = vld [vmem:[%s0] sm:$0xf]
      %v299 = vld [vmem:[%s0 + $0x4] sm:$0xf]
      %v300 = vld [vmem:[%s0 + $0x8] sm:$0xf]
      %v301 = vld [vmem:[%s0 + $0xc] sm:$0xf]
      %v302 = vld [vmem:[%s0 + $0x10] sm:$0xf]
      %v303 = vld [vmem:[%s0 + $0x14] sm:$0xf]
      %v304 = vld [vmem:[%s0 + $0x18] sm:$0xf]
      %v305 = vld [vmem:[%s0 + $0x1c] sm:$0xf]
      %v306 = vld [vmem:[%s0 + $0x20] sm:$0xf]
      %v307 = vld [vmem:[%s0 + $0x24] sm:$0xf]
      %v308 = vld [vmem:[%s0 + $0x28] sm:$0xf]
      %v309 = vld [vmem:[%s0 + $0x2c] sm:$0xf]
      %s310 = scalar_lea.vmem %s246, 64
      %v311 = vld [vmem:[%s310] sm:$0xf]
      %v312 = vld [vmem:[%s310 + $0x4] sm:$0xf]
      %v313 = vld [vmem:[%s310 + $0x8] sm:$0xf]
      %v314 = vld [vmem:[%s310 + $0xc] sm:$0xf]
      %v315 = vld [vmem:[%s310 + $0x10] sm:$0xf]
      %v316 = vld [vmem:[%s310 + $0x14] sm:$0xf]
      %v317 = vld [vmem:[%s310 + $0x18] sm:$0xf]
      %v318 = vld [vmem:[%s310 + $0x1c] sm:$0xf]
      %v319 = vld [vmem:[%s310 + $0x20] sm:$0xf]
      %v320 = vld [vmem:[%s310 + $0x24] sm:$0xf]
      %v321 = vld [vmem:[%s310 + $0x28] sm:$0xf]
      %v322 = vld [vmem:[%s310 + $0x2c] sm:$0xf]
      %v323 = vld [vmem:[%s310 + $0x30] sm:$0xf]
      %v324 = vld [vmem:[%s310 + $0x34] sm:$0xf]
      %v325 = vld [vmem:[%s310 + $0x38] sm:$0xf]
      %v326 = vld [vmem:[%s310 + $0x3c] sm:$0xf]
      %v327 = vunpack.c.l.bf16 %v311
      %v328 = vunpack.c.l.bf16 %v312
      %v329 = vunpack.c.l.bf16 %v313
      %v330 = vunpack.c.l.bf16 %v314
      %v331 = vunpack.c.l.bf16 %v315
      %v332 = vunpack.c.l.bf16 %v316
      %v333 = vunpack.c.l.bf16 %v317
      %v334 = vunpack.c.l.bf16 %v318
      %v335 = vunpack.c.l.bf16 %v319
      %v336 = vunpack.c.l.bf16 %v320
      %v337 = vunpack.c.l.bf16 %v321
      %v338 = vunpack.c.l.bf16 %v322
      %v339 = vunpack.c.l.bf16 %v323
      %v340 = vunpack.c.l.bf16 %v324
      %v341 = vunpack.c.l.bf16 %v325
      %v342 = vunpack.c.l.bf16 %v326
      %v359 = vunpack.c.l.b16 %v261
      %v360 = vunpack.c.l.b16 %v262
      %v361 = vunpack.c.l.b16 %v263
      %v362 = vunpack.c.l.b16 %v264
      %v363 = vunpack.c.l.b16 %v265
      %v364 = vunpack.c.l.b16 %v266
      %v365 = vunpack.c.l.b16 %v267
      %v366 = vunpack.c.l.b16 %v268
      %v367 = vunpack.c.l.b16 %v269
      %v368 = vunpack.c.l.b16 %v270
      %v369 = vunpack.c.l.b16 %v271
      %v370 = vunpack.c.l.b16 %v272
      %v371 = vunpack.c.l.b16 %v273
      %v372 = vunpack.c.l.b16 %v274
      %v373 = vunpack.c.l.b16 %v275
      %v374 = vunpack.c.l.b16 %v276
      %v375 = vpack.c.b16 %v360, %v359
      %v376 = vpack.c.b16 %v362, %v361
      %v377 = vpack.c.b16 %v364, %v363
      %v378 = vpack.c.b16 %v366, %v365
      %v379 = vpack.c.b16 %v368, %v367
      %v380 = vpack.c.b16 %v370, %v369
      %v381 = vpack.c.b16 %v372, %v371
      %v382 = vpack.c.b16 %v374, %v373
      %v407 = vunpack.c.l.b16 %v282
      %v408 = vunpack.c.l.b16 %v283
      %v409 = vunpack.c.l.b16 %v284
      %v410 = vunpack.c.l.b16 %v285
      %v411 = vunpack.c.l.b16 %v286
      %v412 = vunpack.c.l.b16 %v287
      %v413 = vunpack.c.l.b16 %v288
      %v414 = vunpack.c.l.b16 %v289
      %v415 = vunpack.c.l.b16 %v290
      %v416 = vunpack.c.l.b16 %v291
      %v417 = vunpack.c.l.b16 %v292
      %v418 = vunpack.c.l.b16 %v293
      %v419 = vunpack.c.l.b16 %v294
      %v420 = vunpack.c.l.b16 %v295
      %v421 = vunpack.c.l.b16 %v296
      %v422 = vunpack.c.l.b16 %v297
      %v423 = vpack.c.b16 %v408, %v407
      %v424 = vpack.c.b16 %v410, %v409
      %v425 = vpack.c.b16 %v412, %v411
      %v426 = vpack.c.b16 %v414, %v413
      %v427 = vpack.c.b16 %v416, %v415
      %v428 = vpack.c.b16 %v418, %v417
      %v429 = vpack.c.b16 %v420, %v419
      %v430 = vpack.c.b16 %v422, %v421
      %439 = vmatprep.subr.bf16.mxu0 0
      %440 = vmatpush1.bf16.msra.mxu0 %v423
      %441 = vmatprep.subr.bf16.mxu0 0
      %442 = vmatpush1.bf16.msra.mxu0 %v424
      %443 = vmatprep.subr.bf16.mxu0 0
      %444 = vmatpush1.bf16.msra.mxu0 %v425
      %445 = vmatprep.subr.bf16.mxu0 0
      %446 = vmatpush1.bf16.msra.mxu0 %v426
      %447 = vmatprep.subr.bf16.mxu0 0
      %448 = vmatpush1.bf16.msra.mxu0 %v427
      %449 = vmatprep.subr.bf16.mxu0 0
      %450 = vmatpush1.bf16.msra.mxu0 %v428
      %451 = vmatprep.subr.bf16.mxu0 0
      %452 = vmatpush1.bf16.msra.mxu0 %v429
      %453 = vmatprep.subr.bf16.mxu0 0
      %454 = vmatpush1.bf16.msra.mxu0 %v430
      %455 = vmatprep.subr.bf16.mxu0 0
      %456 = vmatpush1.bf16.msra.mxu0 0
      %457 = vmatprep.subr.bf16.mxu0 0
      %458 = vmatpush1.bf16.msra.mxu0 0
      %459 = vmatprep.subr.bf16.mxu0 0
      %460 = vmatpush1.bf16.msra.mxu0 0
      %461 = vmatprep.subr.bf16.mxu0 0
      %462 = vmatpush1.bf16.msra.mxu0 0
      %463 = vmatprep.subr.bf16.mxu0 0
      %464 = vmatpush1.bf16.msra.mxu0 0
      %465 = vmatprep.subr.bf16.mxu0 0
      %466 = vmatpush1.bf16.msra.mxu0 0
      %467 = vmatprep.subr.bf16.mxu0 0
      %468 = vmatpush1.bf16.msra.mxu0 0
      %469 = vmatprep.subr.bf16.mxu0 0
      %470 = vmatpush1.bf16.msra.mxu0 0
      %471 = vmatprep.mubr.bf16.mxu0 0
      %472 = vmatmul.mubr.bf16.gmra.mrb[0].mxu0 %v375
      %v473 = vpop.f32.mrb[0].mxu0
      %v474 = vadd.f32 %v327, %v473
      %v475 = vpop.f32.mrb[0].mxu0
      %v476 = vpop.f32.mrb[0].mxu0
      %v477 = vadd.f32 %v328, %v476
      %v478 = vpop.f32.mrb[0].mxu0
      %479 = vmatprep.mubr.bf16.mxu0 0
      %480 = vmatmul.mubr.bf16.gmra.mrb[0].mxu0 %v376
      %v481 = vpop.f32.mrb[0].mxu0
      %v482 = vadd.f32 %v329, %v481
      %v483 = vpop.f32.mrb[0].mxu0
      %v484 = vpop.f32.mrb[0].mxu0
      %v485 = vadd.f32 %v330, %v484
      %v486 = vpop.f32.mrb[0].mxu0
      %487 = vmatprep.mubr.bf16.mxu0 0
      %488 = vmatmul.mubr.bf16.gmra.mrb[0].mxu0 %v377
      %v489 = vpop.f32.mrb[0].mxu0
      %v490 = vadd.f32 %v331, %v489
      %v491 = vpop.f32.mrb[0].mxu0
      %v492 = vpop.f32.mrb[0].mxu0
      %v493 = vadd.f32 %v332, %v492
      %v494 = vpop.f32.mrb[0].mxu0
      %495 = vmatprep.mubr.bf16.mxu0 0
      %496 = vmatmul.mubr.bf16.gmra.mrb[0].mxu0 %v378
      %v497 = vpop.f32.mrb[0].mxu0
      %v498 = vadd.f32 %v333, %v497
      %v499 = vpop.f32.mrb[0].mxu0
      %v500 = vpop.f32.mrb[0].mxu0
      %v501 = vadd.f32 %v334, %v500
      %v502 = vpop.f32.mrb[0].mxu0
      %503 = vmatprep.mubr.bf16.mxu0 0
      %504 = vmatmul.mubr.bf16.gmra.mrb[0].mxu0 %v379
      %v505 = vpop.f32.mrb[0].mxu0
      %v506 = vadd.f32 %v335, %v505
      %v507 = vpop.f32.mrb[0].mxu0
      %v508 = vpop.f32.mrb[0].mxu0
      %v509 = vadd.f32 %v336, %v508
      %v510 = vpop.f32.mrb[0].mxu0
      %511 = vmatprep.mubr.bf16.mxu0 0
      %512 = vmatmul.mubr.bf16.gmra.mrb[0].mxu0 %v380
      %v513 = vpop.f32.mrb[0].mxu0
      %v514 = vadd.f32 %v337, %v513
      %v515 = vpop.f32.mrb[0].mxu0
      %v516 = vpop.f32.mrb[0].mxu0
      %v517 = vadd.f32 %v338, %v516
      %v518 = vpop.f32.mrb[0].mxu0
      %519 = vmatprep.mubr.bf16.mxu0 0
      %520 = vmatmul.mubr.bf16.gmra.mrb[0].mxu0 %v381
      %v521 = vpop.f32.mrb[0].mxu0
      %v522 = vadd.f32 %v339, %v521
      %v523 = vpop.f32.mrb[0].mxu0
      %v524 = vpop.f32.mrb[0].mxu0
      %v525 = vadd.f32 %v340, %v524
      %v526 = vpop.f32.mrb[0].mxu0
      %527 = vmatprep.mubr.bf16.mxu0 0
      %528 = vmatmul.mubr.bf16.gmra.mrb[0].mxu0 %v382
      %v529 = vpop.f32.mrb[0].mxu0
      %v530 = vadd.f32 %v341, %v529
      %v531 = vpop.f32.mrb[0].mxu0
      %v532 = vpop.f32.mrb[0].mxu0
      %v533 = vadd.f32 %v342, %v532
      %v534 = vpop.f32.mrb[0].mxu0
      %535 = vdwg.mxu0
      %v536 = vpack.c.bf16 %v477, %v474
      %v537 = vpack.c.bf16 %v485, %v482
      %v538 = vpack.c.bf16 %v493, %v490
      %v539 = vpack.c.bf16 %v501, %v498
      %v540 = vpack.c.bf16 %v509, %v506
      %v541 = vpack.c.bf16 %v517, %v514
      %v542 = vpack.c.bf16 %v525, %v522
      %v543 = vpack.c.bf16 %v533, %v530
      %v544 = vlaneseq
      %v545 = vshrl.u32 %v544, 7
      %v546 = vsub.s32 0, %v545
      %v547 = vrot.slane %v277, %v546
      %v552 = vunpack.c.l.b16 %v298
      %v553 = vunpack.c.l.b16 %v299
      %v554 = vunpack.c.l.b16 %v300
      %v555 = vunpack.c.l.b16 %v301
      %v556 = vpack.c.b16 %v553, %v552
      %v557 = vpack.c.b16 %v555, %v554
      %vm560 = vcmask 261120
      %v562 = vsel %vm560, %v536, 0
      %v565 = vsel %vm560, %v537, 0
      %v568 = vsel %vm560, %v538, 0
      %v571 = vsel %vm560, %v539, 0
      %v574 = vsel %vm560, %v540, 0
      %v577 = vsel %vm560, %v541, 0
      %v580 = vsel %vm560, %v542, 0
      %v583 = vsel %vm560, %v543, 0
      %585 = vmatprep.subr.bf16.mxu0 0
      %586 = vmatpush1.bf16.msra.mxu0 %v556
      %587 = vmatprep.subr.bf16.mxu0 0
      %588 = vmatpush1.bf16.msra.mxu0 %v557
      %589 = vmatprep.subr.bf16.mxu0 0
      %590 = vmatpush1.bf16.msra.mxu0 0
      %591 = vmatprep.subr.bf16.mxu0 0
      %592 = vmatpush1.bf16.msra.mxu0 0
      %593 = vmatprep.subr.bf16.mxu0 0
      %594 = vmatpush1.bf16.msra.mxu0 0
      %595 = vmatprep.subr.bf16.mxu0 0
      %596 = vmatpush1.bf16.msra.mxu0 0
      %597 = vmatprep.subr.bf16.mxu0 0
      %598 = vmatpush1.bf16.msra.mxu0 0
      %599 = vmatprep.subr.bf16.mxu0 0
      %600 = vmatpush1.bf16.msra.mxu0 0
      %601 = vmatprep.subr.bf16.mxu0 0
      %602 = vmatpush1.bf16.msra.mxu0 0
      %603 = vmatprep.subr.bf16.mxu0 0
      %604 = vmatpush1.bf16.msra.mxu0 0
      %605 = vmatprep.subr.bf16.mxu0 0
      %606 = vmatpush1.bf16.msra.mxu0 0
      %607 = vmatprep.subr.bf16.mxu0 0
      %608 = vmatpush1.bf16.msra.mxu0 0
      %609 = vmatprep.subr.bf16.mxu0 0
      %610 = vmatpush1.bf16.msra.mxu0 0
      %611 = vmatprep.subr.bf16.mxu0 0
      %612 = vmatpush1.bf16.msra.mxu0 0
      %613 = vmatprep.subr.bf16.mxu0 0
      %614 = vmatpush1.bf16.msra.mxu0 0
      %615 = vmatprep.subr.bf16.mxu0 0
      %616 = vmatpush1.bf16.msra.mxu0 0
      %617 = vmatprep.mubr.bf16.mxu0 0
      %618 = vmatmul.mubr.bf16.gmra.mrb[0].mxu0 %v562
      %v619 = vpop.f32.mrb[0].mxu0
      %v620 = vadd.f32 %v547, %v619
      %v621 = vpop.f32.mrb[0].mxu0
      %v622 = vpop.f32.mrb[0].mxu0
      %v623 = vadd.f32 %v547, %v622
      %v624 = vpop.f32.mrb[0].mxu0
      %625 = vmatprep.mubr.bf16.mxu0 0
      %626 = vmatmul.mubr.bf16.gmra.mrb[0].mxu0 %v565
      %v627 = vpop.f32.mrb[0].mxu0
      %v628 = vadd.f32 %v547, %v627
      %v629 = vpop.f32.mrb[0].mxu0
      %v630 = vpop.f32.mrb[0].mxu0
      %v631 = vadd.f32 %v547, %v630
      %v632 = vpop.f32.mrb[0].mxu0
      %633 = vmatprep.mubr.bf16.mxu0 0
      %634 = vmatmul.mubr.bf16.gmra.mrb[0].mxu0 %v568
      %v635 = vpop.f32.mrb[0].mxu0
      %v636 = vadd.f32 %v547, %v635
      %v637 = vpop.f32.mrb[0].mxu0
      %v638 = vpop.f32.mrb[0].mxu0
      %v639 = vadd.f32 %v547, %v638
      %v640 = vpop.f32.mrb[0].mxu0
      %641 = vmatprep.mubr.bf16.mxu0 0
      %642 = vmatmul.mubr.bf16.gmra.mrb[0].mxu0 %v571
      %v643 = vpop.f32.mrb[0].mxu0
      %v644 = vadd.f32 %v547, %v643
      %v645 = vpop.f32.mrb[0].mxu0
      %v646 = vpop.f32.mrb[0].mxu0
      %v647 = vadd.f32 %v547, %v646
      %v648 = vpop.f32.mrb[0].mxu0
      %649 = vmatprep.mubr.bf16.mxu0 0
      %650 = vmatmul.mubr.bf16.gmra.mrb[0].mxu0 %v574
      %v651 = vpop.f32.mrb[0].mxu0
      %v652 = vadd.f32 %v547, %v651
      %v653 = vpop.f32.mrb[0].mxu0
      %v654 = vpop.f32.mrb[0].mxu0
      %v655 = vadd.f32 %v547, %v654
      %v656 = vpop.f32.mrb[0].mxu0
      %657 = vmatprep.mubr.bf16.mxu0 0
      %658 = vmatmul.mubr.bf16.gmra.mrb[0].mxu0 %v577
      %v659 = vpop.f32.mrb[0].mxu0
      %v660 = vadd.f32 %v547, %v659
      %v661 = vpop.f32.mrb[0].mxu0
      %v662 = vpop.f32.mrb[0].mxu0
      %v663 = vadd.f32 %v547, %v662
      %v664 = vpop.f32.mrb[0].mxu0
      %665 = vmatprep.mubr.bf16.mxu0 0
      %666 = vmatmul.mubr.bf16.gmra.mrb[0].mxu0 %v580
      %v667 = vpop.f32.mrb[0].mxu0
      %v668 = vadd.f32 %v547, %v667
      %v669 = vpop.f32.mrb[0].mxu0
      %v670 = vpop.f32.mrb[0].mxu0
      %v671 = vadd.f32 %v547, %v670
      %v672 = vpop.f32.mrb[0].mxu0
      %673 = vmatprep.mubr.bf16.mxu0 0
      %674 = vmatmul.mubr.bf16.gmra.mrb[0].mxu0 %v583
      %v675 = vpop.f32.mrb[0].mxu0
      %v676 = vadd.f32 %v547, %v675
      %v677 = vpop.f32.mrb[0].mxu0
      %v678 = vpop.f32.mrb[0].mxu0
      %v679 = vadd.f32 %v547, %v678
      %v680 = vpop.f32.mrb[0].mxu0
      %681 = vdwg.mxu0
      %v682 = vmax.f32 %v620, 0.0
      %v683 = vmax.f32 %v623, 0.0
      %v684 = vmax.f32 %v628, 0.0
      %v685 = vmax.f32 %v631, 0.0
      %v686 = vmax.f32 %v636, 0.0
      %v687 = vmax.f32 %v639, 0.0
      %v688 = vmax.f32 %v644, 0.0
      %v689 = vmax.f32 %v647, 0.0
      %v690 = vmax.f32 %v652, 0.0
      %v691 = vmax.f32 %v655, 0.0
      %v692 = vmax.f32 %v660, 0.0
      %v693 = vmax.f32 %v663, 0.0
      %v694 = vmax.f32 %v668, 0.0
      %v695 = vmax.f32 %v671, 0.0
      %v696 = vmax.f32 %v676, 0.0
      %v697 = vmax.f32 %v679, 0.0
      %v698 = vpack.c.bf16 %v683, %v682
      %v699 = vpack.c.bf16 %v685, %v684
      %v700 = vpack.c.bf16 %v687, %v686
      %v701 = vpack.c.bf16 %v689, %v688
      %v702 = vpack.c.bf16 %v691, %v690
      %v703 = vpack.c.bf16 %v693, %v692
      %v704 = vpack.c.bf16 %v695, %v694
      %v705 = vpack.c.bf16 %v697, %v696
      %v706 = vlaneseq
      %v707 = vshrl.u32 %v706, 7
      %v708 = vsub.s32 4, %v707
      %v709 = vrot.slane %v277, %v708
      %v718 = vunpack.c.l.b16 %v302
      %v719 = vunpack.c.l.b16 %v303
      %v720 = vunpack.c.l.b16 %v304
      %v721 = vunpack.c.l.b16 %v305
      %v722 = vunpack.c.l.b16 %v306
      %v723 = vunpack.c.l.b16 %v307
      %v724 = vunpack.c.l.b16 %v308
      %v725 = vunpack.c.l.b16 %v309
      %v726 = vpack.c.b16 %v719, %v718
      %v727 = vpack.c.b16 %v721, %v720
      %v728 = vpack.c.b16 %v723, %v722
      %v729 = vpack.c.b16 %v725, %v724
      %vm734 = vcmask 523264
      %v736 = vsel %vm734, %v698, 0
      %v739 = vsel %vm734, %v699, 0
      %v742 = vsel %vm734, %v700, 0
      %v745 = vsel %vm734, %v701, 0
      %v748 = vsel %vm734, %v702, 0
      %v751 = vsel %vm734, %v703, 0
      %v754 = vsel %vm734, %v704, 0
      %v757 = vsel %vm734, %v705, 0
      %759 = vmatprep.subr.bf16.mxu0 0
      %760 = vmatpush1.bf16.msra.mxu0 %v726
      %761 = vmatprep.subr.bf16.mxu0 0
      %762 = vmatpush1.bf16.msra.mxu0 %v727
      %763 = vmatprep.subr.bf16.mxu0 0
      %764 = vmatpush1.bf16.msra.mxu0 %v728
      %765 = vmatprep.subr.bf16.mxu0 0
      %766 = vmatpush1.bf16.msra.mxu0 %v729
      %767 = vmatprep.subr.bf16.mxu0 0
      %768 = vmatpush1.bf16.msra.mxu0 0
      %769 = vmatprep.subr.bf16.mxu0 0
      %770 = vmatpush1.bf16.msra.mxu0 0
      %771 = vmatprep.subr.bf16.mxu0 0
      %772 = vmatpush1.bf16.msra.mxu0 0
      %773 = vmatprep.subr.bf16.mxu0 0
      %774 = vmatpush1.bf16.msra.mxu0 0
      %775 = vmatprep.subr.bf16.mxu0 0
      %776 = vmatpush1.bf16.msra.mxu0 0
      %777 = vmatprep.subr.bf16.mxu0 0
      %778 = vmatpush1.bf16.msra.mxu0 0
      %779 = vmatprep.subr.bf16.mxu0 0
      %780 = vmatpush1.bf16.msra.mxu0 0
      %781 = vmatprep.subr.bf16.mxu0 0
      %782 = vmatpush1.bf16.msra.mxu0 0
      %783 = vmatprep.subr.bf16.mxu0 0
      %784 = vmatpush1.bf16.msra.mxu0 0
      %785 = vmatprep.subr.bf16.mxu0 0
      %786 = vmatpush1.bf16.msra.mxu0 0
      %787 = vmatprep.subr.bf16.mxu0 0
      %788 = vmatpush1.bf16.msra.mxu0 0
      %789 = vmatprep.subr.bf16.mxu0 0
      %790 = vmatpush1.bf16.msra.mxu0 0
      %791 = vmatprep.mubr.bf16.mxu0 0
      %792 = vmatmul.mubr.bf16.gmra.mrb[0].mxu0 %v736
      %v793 = vpop.f32.mrb[0].mxu0
      %v794 = vadd.f32 %v709, %v793
      %v795 = vpop.f32.mrb[0].mxu0
      %v796 = vpop.f32.mrb[0].mxu0
      %v797 = vadd.f32 %v709, %v796
      %v798 = vpop.f32.mrb[0].mxu0
      %799 = vmatprep.mubr.bf16.mxu0 0
      %800 = vmatmul.mubr.bf16.gmra.mrb[0].mxu0 %v739
      %v801 = vpop.f32.mrb[0].mxu0
      %v802 = vadd.f32 %v709, %v801
      %v803 = vpop.f32.mrb[0].mxu0
      %v804 = vpop.f32.mrb[0].mxu0
      %v805 = vadd.f32 %v709, %v804
      %v806 = vpop.f32.mrb[0].mxu0
      %807 = vmatprep.mubr.bf16.mxu0 0
      %808 = vmatmul.mubr.bf16.gmra.mrb[0].mxu0 %v742
      %v809 = vpop.f32.mrb[0].mxu0
      %v810 = vadd.f32 %v709, %v809
      %v811 = vpop.f32.mrb[0].mxu0
      %v812 = vpop.f32.mrb[0].mxu0
      %v813 = vadd.f32 %v709, %v812
      %v814 = vpop.f32.mrb[0].mxu0
      %815 = vmatprep.mubr.bf16.mxu0 0
      %816 = vmatmul.mubr.bf16.gmra.mrb[0].mxu0 %v745
      %v817 = vpop.f32.mrb[0].mxu0
      %v818 = vadd.f32 %v709, %v817
      %v819 = vpop.f32.mrb[0].mxu0
      %v820 = vpop.f32.mrb[0].mxu0
      %v821 = vadd.f32 %v709, %v820
      %v822 = vpop.f32.mrb[0].mxu0
      %823 = vmatprep.mubr.bf16.mxu0 0
      %824 = vmatmul.mubr.bf16.gmra.mrb[0].mxu0 %v748
      %v825 = vpop.f32.mrb[0].mxu0
      %v826 = vadd.f32 %v709, %v825
      %v827 = vpop.f32.mrb[0].mxu0
      %v828 = vpop.f32.mrb[0].mxu0
      %v829 = vadd.f32 %v709, %v828
      %v830 = vpop.f32.mrb[0].mxu0
      %831 = vmatprep.mubr.bf16.mxu0 0
      %832 = vmatmul.mubr.bf16.gmra.mrb[0].mxu0 %v751
      %v833 = vpop.f32.mrb[0].mxu0
      %v834 = vadd.f32 %v709, %v833
      %v835 = vpop.f32.mrb[0].mxu0
      %v836 = vpop.f32.mrb[0].mxu0
      %v837 = vadd.f32 %v709, %v836
      %v838 = vpop.f32.mrb[0].mxu0
      %839 = vmatprep.mubr.bf16.mxu0 0
      %840 = vmatmul.mubr.bf16.gmra.mrb[0].mxu0 %v754
      %v841 = vpop.f32.mrb[0].mxu0
      %v842 = vadd.f32 %v709, %v841
      %v843 = vpop.f32.mrb[0].mxu0
      %v844 = vpop.f32.mrb[0].mxu0
      %v845 = vadd.f32 %v709, %v844
      %v846 = vpop.f32.mrb[0].mxu0
      %847 = vmatprep.mubr.bf16.mxu0 0
      %848 = vmatmul.mubr.bf16.gmra.mrb[0].mxu0 %v757
      %v849 = vpop.f32.mrb[0].mxu0
      %v850 = vadd.f32 %v709, %v849
      %v851 = vpop.f32.mrb[0].mxu0
      %v852 = vpop.f32.mrb[0].mxu0
      %v853 = vadd.f32 %v709, %v852
      %v854 = vpop.f32.mrb[0].mxu0
      %855 = vdwg.mxu0
      %v856 = vmax.f32 %v794, 0.0
      %v857 = vmax.f32 %v797, 0.0
      %v858 = vmax.f32 %v802, 0.0
      %v859 = vmax.f32 %v805, 0.0
      %v860 = vmax.f32 %v810, 0.0
      %v861 = vmax.f32 %v813, 0.0
      %v862 = vmax.f32 %v818, 0.0
      %v863 = vmax.f32 %v821, 0.0
      %v864 = vmax.f32 %v826, 0.0
      %v865 = vmax.f32 %v829, 0.0
      %v866 = vmax.f32 %v834, 0.0
      %v867 = vmax.f32 %v837, 0.0
      %v868 = vmax.f32 %v842, 0.0
      %v869 = vmax.f32 %v845, 0.0
      %v870 = vmax.f32 %v850, 0.0
      %v871 = vmax.f32 %v853, 0.0
      %v872 = vpack.c.bf16 %v857, %v856
      %v873 = vpack.c.bf16 %v859, %v858
      %v874 = vpack.c.bf16 %v861, %v860
      %v875 = vpack.c.bf16 %v863, %v862
      %v876 = vpack.c.bf16 %v865, %v864
      %v877 = vpack.c.bf16 %v867, %v866
      %v878 = vpack.c.bf16 %v869, %v868
      %v879 = vpack.c.bf16 %v871, %v870
      %s880 = scalar_lea.vmem %s0, 48
      %v881 = vld [vmem:[%s880] sm:$0xf]
      %v882 = vld [vmem:[%s880 + $0x4] sm:$0xf]
      %v883 = vld [vmem:[%s880 + $0x8] sm:$0xf]
      %v884 = vld [vmem:[%s880 + $0xc] sm:$0xf]
      %v885 = vld [vmem:[%s880 + $0x10] sm:$0xf]
      %v886 = vld [vmem:[%s880 + $0x14] sm:$0xf]
      %v887 = vld [vmem:[%s880 + $0x18] sm:$0xf]
      %v888 = vld [vmem:[%s880 + $0x1c] sm:$0xf]
      %v889 = vld [vmem:[%s880 + $0x20] sm:$0xf]
      %v890 = vld [vmem:[%s880 + $0x24] sm:$0xf]
      %v891 = vld [vmem:[%s880 + $0x28] sm:$0xf]
      %v892 = vld [vmem:[%s880 + $0x2c] sm:$0xf]
      %s893 = scalar_lea.vmem %s246, 128
      %v894 = vld [vmem:[%s893] sm:$0xf]
      %v895 = vld [vmem:[%s893 + $0x4] sm:$0xf]
      %v896 = vld [vmem:[%s893 + $0x8] sm:$0xf]
      %v897 = vld [vmem:[%s893 + $0xc] sm:$0xf]
      %v898 = vld [vmem:[%s893 + $0x10] sm:$0xf]
      %v899 = vld [vmem:[%s893 + $0x14] sm:$0xf]
      %v900 = vld [vmem:[%s893 + $0x18] sm:$0xf]
      %v901 = vld [vmem:[%s893 + $0x1c] sm:$0xf]
      %v902 = vld [vmem:[%s893 + $0x20] sm:$0xf]
      %v903 = vld [vmem:[%s893 + $0x24] sm:$0xf]
      %v904 = vld [vmem:[%s893 + $0x28] sm:$0xf]
      %v905 = vld [vmem:[%s893 + $0x2c] sm:$0xf]
      %v906 = vld [vmem:[%s893 + $0x30] sm:$0xf]
      %v907 = vld [vmem:[%s893 + $0x34] sm:$0xf]
      %v908 = vld [vmem:[%s893 + $0x38] sm:$0xf]
      %v909 = vld [vmem:[%s893 + $0x3c] sm:$0xf]
      %v910 = vunpack.c.l.bf16 %v894
      %v911 = vunpack.c.l.bf16 %v895
      %v912 = vunpack.c.l.bf16 %v896
      %v913 = vunpack.c.l.bf16 %v897
      %v914 = vunpack.c.l.bf16 %v898
      %v915 = vunpack.c.l.bf16 %v899
      %v916 = vunpack.c.l.bf16 %v900
      %v917 = vunpack.c.l.bf16 %v901
      %v918 = vunpack.c.l.bf16 %v902
      %v919 = vunpack.c.l.bf16 %v903
      %v920 = vunpack.c.l.bf16 %v904
      %v921 = vunpack.c.l.bf16 %v905
      %v922 = vunpack.c.l.bf16 %v906
      %v923 = vunpack.c.l.bf16 %v907
      %v924 = vunpack.c.l.bf16 %v908
      %v925 = vunpack.c.l.bf16 %v909
      %926 = vmatprep.subr.bf16.mxu0 0
      %927 = vmatpush1.bf16.msra.mxu0 %v872
      %928 = vmatprep.subr.bf16.mxu0 0
      %929 = vmatpush1.bf16.msra.mxu0 %v873
      %930 = vmatprep.subr.bf16.mxu0 0
      %931 = vmatpush1.bf16.msra.mxu0 %v874
      %932 = vmatprep.subr.bf16.mxu0 0
      %933 = vmatpush1.bf16.msra.mxu0 %v875
      %934 = vmatprep.subr.bf16.mxu0 0
      %935 = vmatpush1.bf16.msra.mxu0 %v876
      %936 = vmatprep.subr.bf16.mxu0 0
      %937 = vmatpush1.bf16.msra.mxu0 %v877
      %938 = vmatprep.subr.bf16.mxu0 0
      %939 = vmatpush1.bf16.msra.mxu0 %v878
      %940 = vmatprep.subr.bf16.mxu0 0
      %941 = vmatpush1.bf16.msra.mxu0 %v879
      %942 = vmatprep.subr.bf16.mxu0 0
      %943 = vmatpush1.bf16.msra.mxu0 0
      %944 = vmatprep.subr.bf16.mxu0 0
      %945 = vmatpush1.bf16.msra.mxu0 0
      %946 = vmatprep.subr.bf16.mxu0 0
      %947 = vmatpush1.bf16.msra.mxu0 0
      %948 = vmatprep.subr.bf16.mxu0 0
      %949 = vmatpush1.bf16.msra.mxu0 0
      %950 = vmatprep.subr.bf16.mxu0 0
      %951 = vmatpush1.bf16.msra.mxu0 0
      %952 = vmatprep.subr.bf16.mxu0 0
      %953 = vmatpush1.bf16.msra.mxu0 0
      %954 = vmatprep.subr.bf16.mxu0 0
      %955 = vmatpush1.bf16.msra.mxu0 0
      %956 = vmatprep.subr.bf16.mxu0 0
      %957 = vmatpush1.bf16.msra.mxu0 0
      %958 = vmatprep.mubr.bf16.mxu0 0
      %959 = vmatmul.mubr.bf16.gmra.mrb[0].mxu0 %v375
      %v960 = vpop.f32.mrb[0].mxu0
      %v961 = vadd.f32 %v910, %v960
      %v962 = vpop.f32.mrb[0].mxu0
      %v963 = vpop.f32.mrb[0].mxu0
      %v964 = vadd.f32 %v911, %v963
      %v965 = vpop.f32.mrb[0].mxu0
      %966 = vmatprep.mubr.bf16.mxu0 0
      %967 = vmatmul.mubr.bf16.gmra.mrb[0].mxu0 %v376
      %v968 = vpop.f32.mrb[0].mxu0
      %v969 = vadd.f32 %v912, %v968
      %v970 = vpop.f32.mrb[0].mxu0
      %v971 = vpop.f32.mrb[0].mxu0
      %v972 = vadd.f32 %v913, %v971
      %v973 = vpop.f32.mrb[0].mxu0
      %974 = vmatprep.mubr.bf16.mxu0 0
      %975 = vmatmul.mubr.bf16.gmra.mrb[0].mxu0 %v377
      %v976 = vpop.f32.mrb[0].mxu0
      %v977 = vadd.f32 %v914, %v976
      %v978 = vpop.f32.mrb[0].mxu0
      %v979 = vpop.f32.mrb[0].mxu0
      %v980 = vadd.f32 %v915, %v979
      %v981 = vpop.f32.mrb[0].mxu0
      %982 = vmatprep.mubr.bf16.mxu0 0
      %983 = vmatmul.mubr.bf16.gmra.mrb[0].mxu0 %v378
      %v984 = vpop.f32.mrb[0].mxu0
      %v985 = vadd.f32 %v916, %v984
      %v986 = vpop.f32.mrb[0].mxu0
      %v987 = vpop.f32.mrb[0].mxu0
      %v988 = vadd.f32 %v917, %v987
      %v989 = vpop.f32.mrb[0].mxu0
      %990 = vmatprep.mubr.bf16.mxu0 0
      %991 = vmatmul.mubr.bf16.gmra.mrb[0].mxu0 %v379
      %v992 = vpop.f32.mrb[0].mxu0
      %v993 = vadd.f32 %v918, %v992
      %v994 = vpop.f32.mrb[0].mxu0
      %v995 = vpop.f32.mrb[0].mxu0
      %v996 = vadd.f32 %v919, %v995
      %v997 = vpop.f32.mrb[0].mxu0
      %998 = vmatprep.mubr.bf16.mxu0 0
      %999 = vmatmul.mubr.bf16.gmra.mrb[0].mxu0 %v380
      %v1000 = vpop.f32.mrb[0].mxu0
      %v1001 = vadd.f32 %v920, %v1000
      %v1002 = vpop.f32.mrb[0].mxu0
      %v1003 = vpop.f32.mrb[0].mxu0
      %v1004 = vadd.f32 %v921, %v1003
      %v1005 = vpop.f32.mrb[0].mxu0
      %1006 = vmatprep.mubr.bf16.mxu0 0
      %1007 = vmatmul.mubr.bf16.gmra.mrb[0].mxu0 %v381
      %v1008 = vpop.f32.mrb[0].mxu0
      %v1009 = vadd.f32 %v922, %v1008
      %v1010 = vpop.f32.mrb[0].mxu0
      %v1011 = vpop.f32.mrb[0].mxu0
      %v1012 = vadd.f32 %v923, %v1011
      %v1013 = vpop.f32.mrb[0].mxu0
      %1014 = vmatprep.mubr.bf16.mxu0 0
      %1015 = vmatmul.mubr.bf16.gmra.mrb[0].mxu0 %v382
      %v1016 = vpop.f32.mrb[0].mxu0
      %v1017 = vadd.f32 %v924, %v1016
      %v1018 = vpop.f32.mrb[0].mxu0
      %v1019 = vpop.f32.mrb[0].mxu0
      %v1020 = vadd.f32 %v925, %v1019
      %v1021 = vpop.f32.mrb[0].mxu0
      %1022 = vdwg.mxu0
      %v1023 = vpack.c.bf16 %v964, %v961
      %v1024 = vpack.c.bf16 %v972, %v969
      %v1025 = vpack.c.bf16 %v980, %v977
      %v1026 = vpack.c.bf16 %v988, %v985
      %v1027 = vpack.c.bf16 %v996, %v993
      %v1028 = vpack.c.bf16 %v1004, %v1001
      %v1029 = vpack.c.bf16 %v1012, %v1009
      %v1030 = vpack.c.bf16 %v1020, %v1017
      %v1031 = vlaneseq
      %v1032 = vshrl.u32 %v1031, 7
      %v1033 = vsub.s32 1, %v1032
      %v1034 = vrot.slane %v277, %v1033
      %v1039 = vunpack.c.l.b16 %v881
      %v1040 = vunpack.c.l.b16 %v882
      %v1041 = vunpack.c.l.b16 %v883
      %v1042 = vunpack.c.l.b16 %v884
      %v1043 = vpack.c.b16 %v1040, %v1039
      %v1044 = vpack.c.b16 %v1042, %v1041
      %v1048 = vsel %vm560, %v1023, 0
      %v1051 = vsel %vm560, %v1024, 0
      %v1054 = vsel %vm560, %v1025, 0
      %v1057 = vsel %vm560, %v1026, 0
      %v1060 = vsel %vm560, %v1027, 0
      %v1063 = vsel %vm560, %v1028, 0
      %v1066 = vsel %vm560, %v1029, 0
      %v1069 = vsel %vm560, %v1030, 0
      %1071 = vmatprep.subr.bf16.mxu0 0
      %1072 = vmatpush1.bf16.msra.mxu0 %v1043
      %1073 = vmatprep.subr.bf16.mxu0 0
      %1074 = vmatpush1.bf16.msra.mxu0 %v1044
      %1075 = vmatprep.subr.bf16.mxu0 0
      %1076 = vmatpush1.bf16.msra.mxu0 0
      %1077 = vmatprep.subr.bf16.mxu0 0
      %1078 = vmatpush1.bf16.msra.mxu0 0
      %1079 = vmatprep.subr.bf16.mxu0 0
      %1080 = vmatpush1.bf16.msra.mxu0 0
      %1081 = vmatprep.subr.bf16.mxu0 0
      %1082 = vmatpush1.bf16.msra.mxu0 0
      %1083 = vmatprep.subr.bf16.mxu0 0
      %1084 = vmatpush1.bf16.msra.mxu0 0
      %1085 = vmatprep.subr.bf16.mxu0 0
      %1086 = vmatpush1.bf16.msra.mxu0 0
      %1087 = vmatprep.subr.bf16.mxu0 0
      %1088 = vmatpush1.bf16.msra.mxu0 0
      %1089 = vmatprep.subr.bf16.mxu0 0
      %1090 = vmatpush1.bf16.msra.mxu0 0
      %1091 = vmatprep.subr.bf16.mxu0 0
      %1092 = vmatpush1.bf16.msra.mxu0 0
      %1093 = vmatprep.subr.bf16.mxu0 0
      %1094 = vmatpush1.bf16.msra.mxu0 0
      %1095 = vmatprep.subr.bf16.mxu0 0
      %1096 = vmatpush1.bf16.msra.mxu0 0
      %1097 = vmatprep.subr.bf16.mxu0 0
      %1098 = vmatpush1.bf16.msra.mxu0 0
      %1099 = vmatprep.subr.bf16.mxu0 0
      %1100 = vmatpush1.bf16.msra.mxu0 0
      %1101 = vmatprep.subr.bf16.mxu0 0
      %1102 = vmatpush1.bf16.msra.mxu0 0
      %1103 = vmatprep.mubr.bf16.mxu0 0
      %1104 = vmatmul.mubr.bf16.gmra.mrb[0].mxu0 %v1048
      %v1105 = vpop.f32.mrb[0].mxu0
      %v1106 = vadd.f32 %v1034, %v1105
      %v1107 = vpop.f32.mrb[0].mxu0
      %v1108 = vpop.f32.mrb[0].mxu0
      %v1109 = vadd.f32 %v1034, %v1108
      %v1110 = vpop.f32.mrb[0].mxu0
      %1111 = vmatprep.mubr.bf16.mxu0 0
      %1112 = vmatmul.mubr.bf16.gmra.mrb[0].mxu0 %v1051
      %v1113 = vpop.f32.mrb[0].mxu0
      %v1114 = vadd.f32 %v1034, %v1113
      %v1115 = vpop.f32.mrb[0].mxu0
      %v1116 = vpop.f32.mrb[0].mxu0
      %v1117 = vadd.f32 %v1034, %v1116
      %v1118 = vpop.f32.mrb[0].mxu0
      %1119 = vmatprep.mubr.bf16.mxu0 0
      %1120 = vmatmul.mubr.bf16.gmra.mrb[0].mxu0 %v1054
      %v1121 = vpop.f32.mrb[0].mxu0
      %v1122 = vadd.f32 %v1034, %v1121
      %v1123 = vpop.f32.mrb[0].mxu0
      %v1124 = vpop.f32.mrb[0].mxu0
      %v1125 = vadd.f32 %v1034, %v1124
      %v1126 = vpop.f32.mrb[0].mxu0
      %1127 = vmatprep.mubr.bf16.mxu0 0
      %1128 = vmatmul.mubr.bf16.gmra.mrb[0].mxu0 %v1057
      %v1129 = vpop.f32.mrb[0].mxu0
      %v1130 = vadd.f32 %v1034, %v1129
      %v1131 = vpop.f32.mrb[0].mxu0
      %v1132 = vpop.f32.mrb[0].mxu0
      %v1133 = vadd.f32 %v1034, %v1132
      %v1134 = vpop.f32.mrb[0].mxu0
      %1135 = vmatprep.mubr.bf16.mxu0 0
      %1136 = vmatmul.mubr.bf16.gmra.mrb[0].mxu0 %v1060
      %v1137 = vpop.f32.mrb[0].mxu0
      %v1138 = vadd.f32 %v1034, %v1137
      %v1139 = vpop.f32.mrb[0].mxu0
      %v1140 = vpop.f32.mrb[0].mxu0
      %v1141 = vadd.f32 %v1034, %v1140
      %v1142 = vpop.f32.mrb[0].mxu0
      %1143 = vmatprep.mubr.bf16.mxu0 0
      %1144 = vmatmul.mubr.bf16.gmra.mrb[0].mxu0 %v1063
      %v1145 = vpop.f32.mrb[0].mxu0
      %v1146 = vadd.f32 %v1034, %v1145
      %v1147 = vpop.f32.mrb[0].mxu0
      %v1148 = vpop.f32.mrb[0].mxu0
      %v1149 = vadd.f32 %v1034, %v1148
      %v1150 = vpop.f32.mrb[0].mxu0
      %1151 = vmatprep.mubr.bf16.mxu0 0
      %1152 = vmatmul.mubr.bf16.gmra.mrb[0].mxu0 %v1066
      %v1153 = vpop.f32.mrb[0].mxu0
      %v1154 = vadd.f32 %v1034, %v1153
      %v1155 = vpop.f32.mrb[0].mxu0
      %v1156 = vpop.f32.mrb[0].mxu0
      %v1157 = vadd.f32 %v1034, %v1156
      %v1158 = vpop.f32.mrb[0].mxu0
      %1159 = vmatprep.mubr.bf16.mxu0 0
      %1160 = vmatmul.mubr.bf16.gmra.mrb[0].mxu0 %v1069
      %v1161 = vpop.f32.mrb[0].mxu0
      %v1162 = vadd.f32 %v1034, %v1161
      %v1163 = vpop.f32.mrb[0].mxu0
      %v1164 = vpop.f32.mrb[0].mxu0
      %v1165 = vadd.f32 %v1034, %v1164
      %v1166 = vpop.f32.mrb[0].mxu0
      %1167 = vdwg.mxu0
      %v1168 = vmax.f32 %v1106, 0.0
      %v1169 = vmax.f32 %v1109, 0.0
      %v1170 = vmax.f32 %v1114, 0.0
      %v1171 = vmax.f32 %v1117, 0.0
      %v1172 = vmax.f32 %v1122, 0.0
      %v1173 = vmax.f32 %v1125, 0.0
      %v1174 = vmax.f32 %v1130, 0.0
      %v1175 = vmax.f32 %v1133, 0.0
      %v1176 = vmax.f32 %v1138, 0.0
      %v1177 = vmax.f32 %v1141, 0.0
      %v1178 = vmax.f32 %v1146, 0.0
      %v1179 = vmax.f32 %v1149, 0.0
      %v1180 = vmax.f32 %v1154, 0.0
      %v1181 = vmax.f32 %v1157, 0.0
      %v1182 = vmax.f32 %v1162, 0.0
      %v1183 = vmax.f32 %v1165, 0.0
      %v1184 = vpack.c.bf16 %v1169, %v1168
      %v1185 = vpack.c.bf16 %v1171, %v1170
      %v1186 = vpack.c.bf16 %v1173, %v1172
      %v1187 = vpack.c.bf16 %v1175, %v1174
      %v1188 = vpack.c.bf16 %v1177, %v1176
      %v1189 = vpack.c.bf16 %v1179, %v1178
      %v1190 = vpack.c.bf16 %v1181, %v1180
      %v1191 = vpack.c.bf16 %v1183, %v1182
      %v1192 = vlaneseq
      %v1193 = vshrl.u32 %v1192, 7
      %v1194 = vsub.s32 5, %v1193
      %v1195 = vrot.slane %v277, %v1194
      %v1204 = vunpack.c.l.b16 %v885
      %v1205 = vunpack.c.l.b16 %v886
      %v1206 = vunpack.c.l.b16 %v887
      %v1207 = vunpack.c.l.b16 %v888
      %v1208 = vunpack.c.l.b16 %v889
      %v1209 = vunpack.c.l.b16 %v890
      %v1210 = vunpack.c.l.b16 %v891
      %v1211 = vunpack.c.l.b16 %v892
      %v1212 = vpack.c.b16 %v1205, %v1204
      %v1213 = vpack.c.b16 %v1207, %v1206
      %v1214 = vpack.c.b16 %v1209, %v1208
      %v1215 = vpack.c.b16 %v1211, %v1210
      %v1221 = vsel %vm734, %v1184, 0
      %v1224 = vsel %vm734, %v1185, 0
      %v1227 = vsel %vm734, %v1186, 0
      %v1230 = vsel %vm734, %v1187, 0
      %v1233 = vsel %vm734, %v1188, 0
      %v1236 = vsel %vm734, %v1189, 0
      %v1239 = vsel %vm734, %v1190, 0
      %v1242 = vsel %vm734, %v1191, 0
      %1244 = vmatprep.subr.bf16.mxu0 0
      %1245 = vmatpush1.bf16.msra.mxu0 %v1212
      %1246 = vmatprep.subr.bf16.mxu0 0
      %1247 = vmatpush1.bf16.msra.mxu0 %v1213
      %1248 = vmatprep.subr.bf16.mxu0 0
      %1249 = vmatpush1.bf16.msra.mxu0 %v1214
      %1250 = vmatprep.subr.bf16.mxu0 0
      %1251 = vmatpush1.bf16.msra.mxu0 %v1215
      %1252 = vmatprep.subr.bf16.mxu0 0
      %1253 = vmatpush1.bf16.msra.mxu0 0
      %1254 = vmatprep.subr.bf16.mxu0 0
      %1255 = vmatpush1.bf16.msra.mxu0 0
      %1256 = vmatprep.subr.bf16.mxu0 0
      %1257 = vmatpush1.bf16.msra.mxu0 0
      %1258 = vmatprep.subr.bf16.mxu0 0
      %1259 = vmatpush1.bf16.msra.mxu0 0
      %1260 = vmatprep.subr.bf16.mxu0 0
      %1261 = vmatpush1.bf16.msra.mxu0 0
      %1262 = vmatprep.subr.bf16.mxu0 0
      %1263 = vmatpush1.bf16.msra.mxu0 0
      %1264 = vmatprep.subr.bf16.mxu0 0
      %1265 = vmatpush1.bf16.msra.mxu0 0
      %1266 = vmatprep.subr.bf16.mxu0 0
      %1267 = vmatpush1.bf16.msra.mxu0 0
      %1268 = vmatprep.subr.bf16.mxu0 0
      %1269 = vmatpush1.bf16.msra.mxu0 0
      %1270 = vmatprep.subr.bf16.mxu0 0
      %1271 = vmatpush1.bf16.msra.mxu0 0
      %1272 = vmatprep.subr.bf16.mxu0 0
      %1273 = vmatpush1.bf16.msra.mxu0 0
      %1274 = vmatprep.subr.bf16.mxu0 0
      %1275 = vmatpush1.bf16.msra.mxu0 0
      %1276 = vmatprep.mubr.bf16.mxu0 0
      %1277 = vmatmul.mubr.bf16.gmra.mrb[0].mxu0 %v1221
      %v1278 = vpop.f32.mrb[0].mxu0
      %v1279 = vadd.f32 %v1195, %v1278
      %v1280 = vpop.f32.mrb[0].mxu0
      %v1281 = vpop.f32.mrb[0].mxu0
      %v1282 = vadd.f32 %v1195, %v1281
      %v1283 = vpop.f32.mrb[0].mxu0
      %1284 = vmatprep.mubr.bf16.mxu0 0
      %1285 = vmatmul.mubr.bf16.gmra.mrb[0].mxu0 %v1224
      %v1286 = vpop.f32.mrb[0].mxu0
      %v1287 = vadd.f32 %v1195, %v1286
      %v1288 = vpop.f32.mrb[0].mxu0
      %v1289 = vpop.f32.mrb[0].mxu0
      %v1290 = vadd.f32 %v1195, %v1289
      %v1291 = vpop.f32.mrb[0].mxu0
      %1292 = vmatprep.mubr.bf16.mxu0 0
      %1293 = vmatmul.mubr.bf16.gmra.mrb[0].mxu0 %v1227
      %v1294 = vpop.f32.mrb[0].mxu0
      %v1295 = vadd.f32 %v1195, %v1294
      %v1296 = vpop.f32.mrb[0].mxu0
      %v1297 = vpop.f32.mrb[0].mxu0
      %v1298 = vadd.f32 %v1195, %v1297
      %v1299 = vpop.f32.mrb[0].mxu0
      %1300 = vmatprep.mubr.bf16.mxu0 0
      %1301 = vmatmul.mubr.bf16.gmra.mrb[0].mxu0 %v1230
      %v1302 = vpop.f32.mrb[0].mxu0
      %v1303 = vadd.f32 %v1195, %v1302
      %v1304 = vpop.f32.mrb[0].mxu0
      %v1305 = vpop.f32.mrb[0].mxu0
      %v1306 = vadd.f32 %v1195, %v1305
      %v1307 = vpop.f32.mrb[0].mxu0
      %1308 = vmatprep.mubr.bf16.mxu0 0
      %1309 = vmatmul.mubr.bf16.gmra.mrb[0].mxu0 %v1233
      %v1310 = vpop.f32.mrb[0].mxu0
      %v1311 = vadd.f32 %v1195, %v1310
      %v1312 = vpop.f32.mrb[0].mxu0
      %v1313 = vpop.f32.mrb[0].mxu0
      %v1314 = vadd.f32 %v1195, %v1313
      %v1315 = vpop.f32.mrb[0].mxu0
      %1316 = vmatprep.mubr.bf16.mxu0 0
      %1317 = vmatmul.mubr.bf16.gmra.mrb[0].mxu0 %v1236
      %v1318 = vpop.f32.mrb[0].mxu0
      %v1319 = vadd.f32 %v1195, %v1318
      %v1320 = vpop.f32.mrb[0].mxu0
      %v1321 = vpop.f32.mrb[0].mxu0
      %v1322 = vadd.f32 %v1195, %v1321
      %v1323 = vpop.f32.mrb[0].mxu0
      %1324 = vmatprep.mubr.bf16.mxu0 0
      %1325 = vmatmul.mubr.bf16.gmra.mrb[0].mxu0 %v1239
      %v1326 = vpop.f32.mrb[0].mxu0
      %v1327 = vadd.f32 %v1195, %v1326
      %v1328 = vpop.f32.mrb[0].mxu0
      %v1329 = vpop.f32.mrb[0].mxu0
      %v1330 = vadd.f32 %v1195, %v1329
      %v1331 = vpop.f32.mrb[0].mxu0
      %1332 = vmatprep.mubr.bf16.mxu0 0
      %1333 = vmatmul.mubr.bf16.gmra.mrb[0].mxu0 %v1242
      %v1334 = vpop.f32.mrb[0].mxu0
      %v1335 = vadd.f32 %v1195, %v1334
      %v1336 = vpop.f32.mrb[0].mxu0
      %v1337 = vpop.f32.mrb[0].mxu0
      %v1338 = vadd.f32 %v1195, %v1337
      %v1339 = vpop.f32.mrb[0].mxu0
      %1340 = vdwg.mxu0
      %v1341 = vmax.f32 %v1279, 0.0
      %v1342 = vmax.f32 %v1282, 0.0
      %v1343 = vmax.f32 %v1287, 0.0
      %v1344 = vmax.f32 %v1290, 0.0
      %v1345 = vmax.f32 %v1295, 0.0
      %v1346 = vmax.f32 %v1298, 0.0
      %v1347 = vmax.f32 %v1303, 0.0
      %v1348 = vmax.f32 %v1306, 0.0
      %v1349 = vmax.f32 %v1311, 0.0
      %v1350 = vmax.f32 %v1314, 0.0
      %v1351 = vmax.f32 %v1319, 0.0
      %v1352 = vmax.f32 %v1322, 0.0
      %v1353 = vmax.f32 %v1327, 0.0
      %v1354 = vmax.f32 %v1330, 0.0
      %v1355 = vmax.f32 %v1335, 0.0
      %v1356 = vmax.f32 %v1338, 0.0
      %v1357 = vpack.c.bf16 %v1342, %v1341
      %v1358 = vpack.c.bf16 %v1344, %v1343
      %v1359 = vpack.c.bf16 %v1346, %v1345
      %v1360 = vpack.c.bf16 %v1348, %v1347
      %v1361 = vpack.c.bf16 %v1350, %v1349
      %v1362 = vpack.c.bf16 %v1352, %v1351
      %v1363 = vpack.c.bf16 %v1354, %v1353
      %v1364 = vpack.c.bf16 %v1356, %v1355
      %s1365 = scalar_lea.vmem %s0, 96
      %v1366 = vld [vmem:[%s1365] sm:$0xf]
      %v1367 = vld [vmem:[%s1365 + $0x4] sm:$0xf]
      %v1368 = vld [vmem:[%s1365 + $0x8] sm:$0xf]
      %v1369 = vld [vmem:[%s1365 + $0xc] sm:$0xf]
      %v1370 = vld [vmem:[%s1365 + $0x10] sm:$0xf]
      %v1371 = vld [vmem:[%s1365 + $0x14] sm:$0xf]
      %v1372 = vld [vmem:[%s1365 + $0x18] sm:$0xf]
      %v1373 = vld [vmem:[%s1365 + $0x1c] sm:$0xf]
      %v1374 = vld [vmem:[%s1365 + $0x20] sm:$0xf]
      %v1375 = vld [vmem:[%s1365 + $0x24] sm:$0xf]
      %v1376 = vld [vmem:[%s1365 + $0x28] sm:$0xf]
      %v1377 = vld [vmem:[%s1365 + $0x2c] sm:$0xf]
      %s1378 = scalar_lea.vmem %s246, 192
      %v1379 = vld [vmem:[%s1378] sm:$0xf]
      %v1380 = vld [vmem:[%s1378 + $0x4] sm:$0xf]
      %v1381 = vld [vmem:[%s1378 + $0x8] sm:$0xf]
      %v1382 = vld [vmem:[%s1378 + $0xc] sm:$0xf]
      %v1383 = vld [vmem:[%s1378 + $0x10] sm:$0xf]
      %v1384 = vld [vmem:[%s1378 + $0x14] sm:$0xf]
      %v1385 = vld [vmem:[%s1378 + $0x18] sm:$0xf]
      %v1386 = vld [vmem:[%s1378 + $0x1c] sm:$0xf]
      %v1387 = vld [vmem:[%s1378 + $0x20] sm:$0xf]
      %v1388 = vld [vmem:[%s1378 + $0x24] sm:$0xf]
      %v1389 = vld [vmem:[%s1378 + $0x28] sm:$0xf]
      %v1390 = vld [vmem:[%s1378 + $0x2c] sm:$0xf]
      %v1391 = vld [vmem:[%s1378 + $0x30] sm:$0xf]
      %v1392 = vld [vmem:[%s1378 + $0x34] sm:$0xf]
      %v1393 = vld [vmem:[%s1378 + $0x38] sm:$0xf]
      %v1394 = vld [vmem:[%s1378 + $0x3c] sm:$0xf]
      %v1395 = vunpack.c.l.bf16 %v1379
      %v1396 = vunpack.c.l.bf16 %v1380
      %v1397 = vunpack.c.l.bf16 %v1381
      %v1398 = vunpack.c.l.bf16 %v1382
      %v1399 = vunpack.c.l.bf16 %v1383
      %v1400 = vunpack.c.l.bf16 %v1384
      %v1401 = vunpack.c.l.bf16 %v1385
      %v1402 = vunpack.c.l.bf16 %v1386
      %v1403 = vunpack.c.l.bf16 %v1387
      %v1404 = vunpack.c.l.bf16 %v1388
      %v1405 = vunpack.c.l.bf16 %v1389
      %v1406 = vunpack.c.l.bf16 %v1390
      %v1407 = vunpack.c.l.bf16 %v1391
      %v1408 = vunpack.c.l.bf16 %v1392
      %v1409 = vunpack.c.l.bf16 %v1393
      %v1410 = vunpack.c.l.bf16 %v1394
      %1411 = vmatprep.subr.bf16.mxu0 0
      %1412 = vmatpush1.bf16.msra.mxu0 %v1357
      %1413 = vmatprep.subr.bf16.mxu0 0
      %1414 = vmatpush1.bf16.msra.mxu0 %v1358
      %1415 = vmatprep.subr.bf16.mxu0 0
      %1416 = vmatpush1.bf16.msra.mxu0 %v1359
      %1417 = vmatprep.subr.bf16.mxu0 0
      %1418 = vmatpush1.bf16.msra.mxu0 %v1360
      %1419 = vmatprep.subr.bf16.mxu0 0
      %1420 = vmatpush1.bf16.msra.mxu0 %v1361
      %1421 = vmatprep.subr.bf16.mxu0 0
      %1422 = vmatpush1.bf16.msra.mxu0 %v1362
      %1423 = vmatprep.subr.bf16.mxu0 0
      %1424 = vmatpush1.bf16.msra.mxu0 %v1363
      %1425 = vmatprep.subr.bf16.mxu0 0
      %1426 = vmatpush1.bf16.msra.mxu0 %v1364
      %1427 = vmatprep.subr.bf16.mxu0 0
      %1428 = vmatpush1.bf16.msra.mxu0 0
      %1429 = vmatprep.subr.bf16.mxu0 0
      %1430 = vmatpush1.bf16.msra.mxu0 0
      %1431 = vmatprep.subr.bf16.mxu0 0
      %1432 = vmatpush1.bf16.msra.mxu0 0
      %1433 = vmatprep.subr.bf16.mxu0 0
      %1434 = vmatpush1.bf16.msra.mxu0 0
      %1435 = vmatprep.subr.bf16.mxu0 0
      %1436 = vmatpush1.bf16.msra.mxu0 0
      %1437 = vmatprep.subr.bf16.mxu0 0
      %1438 = vmatpush1.bf16.msra.mxu0 0
      %1439 = vmatprep.subr.bf16.mxu0 0
      %1440 = vmatpush1.bf16.msra.mxu0 0
      %1441 = vmatprep.subr.bf16.mxu0 0
      %1442 = vmatpush1.bf16.msra.mxu0 0
      %1443 = vmatprep.mubr.bf16.mxu0 0
      %1444 = vmatmul.mubr.bf16.gmra.mrb[0].mxu0 %v375
      %v1445 = vpop.f32.mrb[0].mxu0
      %v1446 = vadd.f32 %v1395, %v1445
      %v1447 = vpop.f32.mrb[0].mxu0
      %v1448 = vpop.f32.mrb[0].mxu0
      %v1449 = vadd.f32 %v1396, %v1448
      %v1450 = vpop.f32.mrb[0].mxu0
      %1451 = vmatprep.mubr.bf16.mxu0 0
      %1452 = vmatmul.mubr.bf16.gmra.mrb[0].mxu0 %v376
      %v1453 = vpop.f32.mrb[0].mxu0
      %v1454 = vadd.f32 %v1397, %v1453
      %v1455 = vpop.f32.mrb[0].mxu0
      %v1456 = vpop.f32.mrb[0].mxu0
      %v1457 = vadd.f32 %v1398, %v1456
      %v1458 = vpop.f32.mrb[0].mxu0
      %1459 = vmatprep.mubr.bf16.mxu0 0
      %1460 = vmatmul.mubr.bf16.gmra.mrb[0].mxu0 %v377
      %v1461 = vpop.f32.mrb[0].mxu0
      %v1462 = vadd.f32 %v1399, %v1461
      %v1463 = vpop.f32.mrb[0].mxu0
      %v1464 = vpop.f32.mrb[0].mxu0
      %v1465 = vadd.f32 %v1400, %v1464
      %v1466 = vpop.f32.mrb[0].mxu0
      %1467 = vmatprep.mubr.bf16.mxu0 0
      %1468 = vmatmul.mubr.bf16.gmra.mrb[0].mxu0 %v378
      %v1469 = vpop.f32.mrb[0].mxu0
      %v1470 = vadd.f32 %v1401, %v1469
      %v1471 = vpop.f32.mrb[0].mxu0
      %v1472 = vpop.f32.mrb[0].mxu0
      %v1473 = vadd.f32 %v1402, %v1472
      %v1474 = vpop.f32.mrb[0].mxu0
      %1475 = vmatprep.mubr.bf16.mxu0 0
      %1476 = vmatmul.mubr.bf16.gmra.mrb[0].mxu0 %v379
      %v1477 = vpop.f32.mrb[0].mxu0
      %v1478 = vadd.f32 %v1403, %v1477
      %v1479 = vpop.f32.mrb[0].mxu0
      %v1480 = vpop.f32.mrb[0].mxu0
      %v1481 = vadd.f32 %v1404, %v1480
      %v1482 = vpop.f32.mrb[0].mxu0
      %1483 = vmatprep.mubr.bf16.mxu0 0
      %1484 = vmatmul.mubr.bf16.gmra.mrb[0].mxu0 %v380
      %v1485 = vpop.f32.mrb[0].mxu0
      %v1486 = vadd.f32 %v1405, %v1485
      %v1487 = vpop.f32.mrb[0].mxu0
      %v1488 = vpop.f32.mrb[0].mxu0
      %v1489 = vadd.f32 %v1406, %v1488
      %v1490 = vpop.f32.mrb[0].mxu0
      %1491 = vmatprep.mubr.bf16.mxu0 0
      %1492 = vmatmul.mubr.bf16.gmra.mrb[0].mxu0 %v381
      %v1493 = vpop.f32.mrb[0].mxu0
      %v1494 = vadd.f32 %v1407, %v1493
      %v1495 = vpop.f32.mrb[0].mxu0
      %v1496 = vpop.f32.mrb[0].mxu0
      %v1497 = vadd.f32 %v1408, %v1496
      %v1498 = vpop.f32.mrb[0].mxu0
      %1499 = vmatprep.mubr.bf16.mxu0 0
      %1500 = vmatmul.mubr.bf16.gmra.mrb[0].mxu0 %v382
      %v1501 = vpop.f32.mrb[0].mxu0
      %v1502 = vadd.f32 %v1409, %v1501
      %v1503 = vpop.f32.mrb[0].mxu0
      %v1504 = vpop.f32.mrb[0].mxu0
      %v1505 = vadd.f32 %v1410, %v1504
      %v1506 = vpop.f32.mrb[0].mxu0
      %1507 = vdwg.mxu0
      %v1508 = vpack.c.bf16 %v1449, %v1446
      %v1509 = vpack.c.bf16 %v1457, %v1454
      %v1510 = vpack.c.bf16 %v1465, %v1462
      %v1511 = vpack.c.bf16 %v1473, %v1470
      %v1512 = vpack.c.bf16 %v1481, %v1478
      %v1513 = vpack.c.bf16 %v1489, %v1486
      %v1514 = vpack.c.bf16 %v1497, %v1494
      %v1515 = vpack.c.bf16 %v1505, %v1502
      %v1516 = vlaneseq
      %v1517 = vshrl.u32 %v1516, 7
      %v1518 = vsub.s32 2, %v1517
      %v1519 = vrot.slane %v277, %v1518
      %v1524 = vunpack.c.l.b16 %v1366
      %v1525 = vunpack.c.l.b16 %v1367
      %v1526 = vunpack.c.l.b16 %v1368
      %v1527 = vunpack.c.l.b16 %v1369
      %v1528 = vpack.c.b16 %v1525, %v1524
      %v1529 = vpack.c.b16 %v1527, %v1526
      %v1533 = vsel %vm560, %v1508, 0
      %v1536 = vsel %vm560, %v1509, 0
      %v1539 = vsel %vm560, %v1510, 0
      %v1542 = vsel %vm560, %v1511, 0
      %v1545 = vsel %vm560, %v1512, 0
      %v1548 = vsel %vm560, %v1513, 0
      %v1551 = vsel %vm560, %v1514, 0
      %v1554 = vsel %vm560, %v1515, 0
      %1556 = vmatprep.subr.bf16.mxu0 0
      %1557 = vmatpush1.bf16.msra.mxu0 %v1528
      %1558 = vmatprep.subr.bf16.mxu0 0
      %1559 = vmatpush1.bf16.msra.mxu0 %v1529
      %1560 = vmatprep.subr.bf16.mxu0 0
      %1561 = vmatpush1.bf16.msra.mxu0 0
      %1562 = vmatprep.subr.bf16.mxu0 0
      %1563 = vmatpush1.bf16.msra.mxu0 0
      %1564 = vmatprep.subr.bf16.mxu0 0
      %1565 = vmatpush1.bf16.msra.mxu0 0
      %1566 = vmatprep.subr.bf16.mxu0 0
      %1567 = vmatpush1.bf16.msra.mxu0 0
      %1568 = vmatprep.subr.bf16.mxu0 0
      %1569 = vmatpush1.bf16.msra.mxu0 0
      %1570 = vmatprep.subr.bf16.mxu0 0
      %1571 = vmatpush1.bf16.msra.mxu0 0
      %1572 = vmatprep.subr.bf16.mxu0 0
      %1573 = vmatpush1.bf16.msra.mxu0 0
      %1574 = vmatprep.subr.bf16.mxu0 0
      %1575 = vmatpush1.bf16.msra.mxu0 0
      %1576 = vmatprep.subr.bf16.mxu0 0
      %1577 = vmatpush1.bf16.msra.mxu0 0
      %1578 = vmatprep.subr.bf16.mxu0 0
      %1579 = vmatpush1.bf16.msra.mxu0 0
      %1580 = vmatprep.subr.bf16.mxu0 0
      %1581 = vmatpush1.bf16.msra.mxu0 0
      %1582 = vmatprep.subr.bf16.mxu0 0
      %1583 = vmatpush1.bf16.msra.mxu0 0
      %1584 = vmatprep.subr.bf16.mxu0 0
      %1585 = vmatpush1.bf16.msra.mxu0 0
      %1586 = vmatprep.subr.bf16.mxu0 0
      %1587 = vmatpush1.bf16.msra.mxu0 0
      %1588 = vmatprep.mubr.bf16.mxu0 0
      %1589 = vmatmul.mubr.bf16.gmra.mrb[0].mxu0 %v1533
      %v1590 = vpop.f32.mrb[0].mxu0
      %v1591 = vadd.f32 %v1519, %v1590
      %v1592 = vpop.f32.mrb[0].mxu0
      %v1593 = vpop.f32.mrb[0].mxu0
      %v1594 = vadd.f32 %v1519, %v1593
      %v1595 = vpop.f32.mrb[0].mxu0
      %1596 = vmatprep.mubr.bf16.mxu0 0
      %1597 = vmatmul.mubr.bf16.gmra.mrb[0].mxu0 %v1536
      %v1598 = vpop.f32.mrb[0].mxu0
      %v1599 = vadd.f32 %v1519, %v1598
      %v1600 = vpop.f32.mrb[0].mxu0
      %v1601 = vpop.f32.mrb[0].mxu0
      %v1602 = vadd.f32 %v1519, %v1601
      %v1603 = vpop.f32.mrb[0].mxu0
      %1604 = vmatprep.mubr.bf16.mxu0 0
      %1605 = vmatmul.mubr.bf16.gmra.mrb[0].mxu0 %v1539
      %v1606 = vpop.f32.mrb[0].mxu0
      %v1607 = vadd.f32 %v1519, %v1606
      %v1608 = vpop.f32.mrb[0].mxu0
      %v1609 = vpop.f32.mrb[0].mxu0
      %v1610 = vadd.f32 %v1519, %v1609
      %v1611 = vpop.f32.mrb[0].mxu0
      %1612 = vmatprep.mubr.bf16.mxu0 0
      %1613 = vmatmul.mubr.bf16.gmra.mrb[0].mxu0 %v1542
      %v1614 = vpop.f32.mrb[0].mxu0
      %v1615 = vadd.f32 %v1519, %v1614
      %v1616 = vpop.f32.mrb[0].mxu0
      %v1617 = vpop.f32.mrb[0].mxu0
      %v1618 = vadd.f32 %v1519, %v1617
      %v1619 = vpop.f32.mrb[0].mxu0
      %1620 = vmatprep.mubr.bf16.mxu0 0
      %1621 = vmatmul.mubr.bf16.gmra.mrb[0].mxu0 %v1545
      %v1622 = vpop.f32.mrb[0].mxu0
      %v1623 = vadd.f32 %v1519, %v1622
      %v1624 = vpop.f32.mrb[0].mxu0
      %v1625 = vpop.f32.mrb[0].mxu0
      %v1626 = vadd.f32 %v1519, %v1625
      %v1627 = vpop.f32.mrb[0].mxu0
      %1628 = vmatprep.mubr.bf16.mxu0 0
      %1629 = vmatmul.mubr.bf16.gmra.mrb[0].mxu0 %v1548
      %v1630 = vpop.f32.mrb[0].mxu0
      %v1631 = vadd.f32 %v1519, %v1630
      %v1632 = vpop.f32.mrb[0].mxu0
      %v1633 = vpop.f32.mrb[0].mxu0
      %v1634 = vadd.f32 %v1519, %v1633
      %v1635 = vpop.f32.mrb[0].mxu0
      %1636 = vmatprep.mubr.bf16.mxu0 0
      %1637 = vmatmul.mubr.bf16.gmra.mrb[0].mxu0 %v1551
      %v1638 = vpop.f32.mrb[0].mxu0
      %v1639 = vadd.f32 %v1519, %v1638
      %v1640 = vpop.f32.mrb[0].mxu0
      %v1641 = vpop.f32.mrb[0].mxu0
      %v1642 = vadd.f32 %v1519, %v1641
      %v1643 = vpop.f32.mrb[0].mxu0
      %1644 = vmatprep.mubr.bf16.mxu0 0
      %1645 = vmatmul.mubr.bf16.gmra.mrb[0].mxu0 %v1554
      %v1646 = vpop.f32.mrb[0].mxu0
      %v1647 = vadd.f32 %v1519, %v1646
      %v1648 = vpop.f32.mrb[0].mxu0
      %v1649 = vpop.f32.mrb[0].mxu0
      %v1650 = vadd.f32 %v1519, %v1649
      %v1651 = vpop.f32.mrb[0].mxu0
      %1652 = vdwg.mxu0
      %v1653 = vmax.f32 %v1591, 0.0
      %v1654 = vmax.f32 %v1594, 0.0
      %v1655 = vmax.f32 %v1599, 0.0
      %v1656 = vmax.f32 %v1602, 0.0
      %v1657 = vmax.f32 %v1607, 0.0
      %v1658 = vmax.f32 %v1610, 0.0
      %v1659 = vmax.f32 %v1615, 0.0
      %v1660 = vmax.f32 %v1618, 0.0
      %v1661 = vmax.f32 %v1623, 0.0
      %v1662 = vmax.f32 %v1626, 0.0
      %v1663 = vmax.f32 %v1631, 0.0
      %v1664 = vmax.f32 %v1634, 0.0
      %v1665 = vmax.f32 %v1639, 0.0
      %v1666 = vmax.f32 %v1642, 0.0
      %v1667 = vmax.f32 %v1647, 0.0
      %v1668 = vmax.f32 %v1650, 0.0
      %v1669 = vpack.c.bf16 %v1654, %v1653
      %v1670 = vpack.c.bf16 %v1656, %v1655
      %v1671 = vpack.c.bf16 %v1658, %v1657
      %v1672 = vpack.c.bf16 %v1660, %v1659
      %v1673 = vpack.c.bf16 %v1662, %v1661
      %v1674 = vpack.c.bf16 %v1664, %v1663
      %v1675 = vpack.c.bf16 %v1666, %v1665
      %v1676 = vpack.c.bf16 %v1668, %v1667
      %v1677 = vlaneseq
      %v1678 = vshrl.u32 %v1677, 7
      %v1679 = vsub.s32 6, %v1678
      %v1680 = vrot.slane %v277, %v1679
      %v1689 = vunpack.c.l.b16 %v1370
      %v1690 = vunpack.c.l.b16 %v1371
      %v1691 = vunpack.c.l.b16 %v1372
      %v1692 = vunpack.c.l.b16 %v1373
      %v1693 = vunpack.c.l.b16 %v1374
      %v1694 = vunpack.c.l.b16 %v1375
      %v1695 = vunpack.c.l.b16 %v1376
      %v1696 = vunpack.c.l.b16 %v1377
      %v1697 = vpack.c.b16 %v1690, %v1689
      %v1698 = vpack.c.b16 %v1692, %v1691
      %v1699 = vpack.c.b16 %v1694, %v1693
      %v1700 = vpack.c.b16 %v1696, %v1695
      %v1706 = vsel %vm734, %v1669, 0
      %v1709 = vsel %vm734, %v1670, 0
      %v1712 = vsel %vm734, %v1671, 0
      %v1715 = vsel %vm734, %v1672, 0
      %v1718 = vsel %vm734, %v1673, 0
      %v1721 = vsel %vm734, %v1674, 0
      %v1724 = vsel %vm734, %v1675, 0
      %v1727 = vsel %vm734, %v1676, 0
      %1729 = vmatprep.subr.bf16.mxu0 0
      %1730 = vmatpush1.bf16.msra.mxu0 %v1697
      %1731 = vmatprep.subr.bf16.mxu0 0
      %1732 = vmatpush1.bf16.msra.mxu0 %v1698
      %1733 = vmatprep.subr.bf16.mxu0 0
      %1734 = vmatpush1.bf16.msra.mxu0 %v1699
      %1735 = vmatprep.subr.bf16.mxu0 0
      %1736 = vmatpush1.bf16.msra.mxu0 %v1700
      %1737 = vmatprep.subr.bf16.mxu0 0
      %1738 = vmatpush1.bf16.msra.mxu0 0
      %1739 = vmatprep.subr.bf16.mxu0 0
      %1740 = vmatpush1.bf16.msra.mxu0 0
      %1741 = vmatprep.subr.bf16.mxu0 0
      %1742 = vmatpush1.bf16.msra.mxu0 0
      %1743 = vmatprep.subr.bf16.mxu0 0
      %1744 = vmatpush1.bf16.msra.mxu0 0
      %1745 = vmatprep.subr.bf16.mxu0 0
      %1746 = vmatpush1.bf16.msra.mxu0 0
      %1747 = vmatprep.subr.bf16.mxu0 0
      %1748 = vmatpush1.bf16.msra.mxu0 0
      %1749 = vmatprep.subr.bf16.mxu0 0
      %1750 = vmatpush1.bf16.msra.mxu0 0
      %1751 = vmatprep.subr.bf16.mxu0 0
      %1752 = vmatpush1.bf16.msra.mxu0 0
      %1753 = vmatprep.subr.bf16.mxu0 0
      %1754 = vmatpush1.bf16.msra.mxu0 0
      %1755 = vmatprep.subr.bf16.mxu0 0
      %1756 = vmatpush1.bf16.msra.mxu0 0
      %1757 = vmatprep.subr.bf16.mxu0 0
      %1758 = vmatpush1.bf16.msra.mxu0 0
      %1759 = vmatprep.subr.bf16.mxu0 0
      %1760 = vmatpush1.bf16.msra.mxu0 0
      %1761 = vmatprep.mubr.bf16.mxu0 0
      %1762 = vmatmul.mubr.bf16.gmra.mrb[0].mxu0 %v1706
      %v1763 = vpop.f32.mrb[0].mxu0
      %v1764 = vadd.f32 %v1680, %v1763
      %v1765 = vpop.f32.mrb[0].mxu0
      %v1766 = vpop.f32.mrb[0].mxu0
      %v1767 = vadd.f32 %v1680, %v1766
      %v1768 = vpop.f32.mrb[0].mxu0
      %1769 = vmatprep.mubr.bf16.mxu0 0
      %1770 = vmatmul.mubr.bf16.gmra.mrb[0].mxu0 %v1709
      %v1771 = vpop.f32.mrb[0].mxu0
      %v1772 = vadd.f32 %v1680, %v1771
      %v1773 = vpop.f32.mrb[0].mxu0
      %v1774 = vpop.f32.mrb[0].mxu0
      %v1775 = vadd.f32 %v1680, %v1774
      %v1776 = vpop.f32.mrb[0].mxu0
      %1777 = vmatprep.mubr.bf16.mxu0 0
      %1778 = vmatmul.mubr.bf16.gmra.mrb[0].mxu0 %v1712
      %v1779 = vpop.f32.mrb[0].mxu0
      %v1780 = vadd.f32 %v1680, %v1779
      %v1781 = vpop.f32.mrb[0].mxu0
      %v1782 = vpop.f32.mrb[0].mxu0
      %v1783 = vadd.f32 %v1680, %v1782
      %v1784 = vpop.f32.mrb[0].mxu0
      %1785 = vmatprep.mubr.bf16.mxu0 0
      %1786 = vmatmul.mubr.bf16.gmra.mrb[0].mxu0 %v1715
      %v1787 = vpop.f32.mrb[0].mxu0
      %v1788 = vadd.f32 %v1680, %v1787
      %v1789 = vpop.f32.mrb[0].mxu0
      %v1790 = vpop.f32.mrb[0].mxu0
      %v1791 = vadd.f32 %v1680, %v1790
      %v1792 = vpop.f32.mrb[0].mxu0
      %1793 = vmatprep.mubr.bf16.mxu0 0
      %1794 = vmatmul.mubr.bf16.gmra.mrb[0].mxu0 %v1718
      %v1795 = vpop.f32.mrb[0].mxu0
      %v1796 = vadd.f32 %v1680, %v1795
      %v1797 = vpop.f32.mrb[0].mxu0
      %v1798 = vpop.f32.mrb[0].mxu0
      %v1799 = vadd.f32 %v1680, %v1798
      %v1800 = vpop.f32.mrb[0].mxu0
      %1801 = vmatprep.mubr.bf16.mxu0 0
      %1802 = vmatmul.mubr.bf16.gmra.mrb[0].mxu0 %v1721
      %v1803 = vpop.f32.mrb[0].mxu0
      %v1804 = vadd.f32 %v1680, %v1803
      %v1805 = vpop.f32.mrb[0].mxu0
      %v1806 = vpop.f32.mrb[0].mxu0
      %v1807 = vadd.f32 %v1680, %v1806
      %v1808 = vpop.f32.mrb[0].mxu0
      %1809 = vmatprep.mubr.bf16.mxu0 0
      %1810 = vmatmul.mubr.bf16.gmra.mrb[0].mxu0 %v1724
      %v1811 = vpop.f32.mrb[0].mxu0
      %v1812 = vadd.f32 %v1680, %v1811
      %v1813 = vpop.f32.mrb[0].mxu0
      %v1814 = vpop.f32.mrb[0].mxu0
      %v1815 = vadd.f32 %v1680, %v1814
      %v1816 = vpop.f32.mrb[0].mxu0
      %1817 = vmatprep.mubr.bf16.mxu0 0
      %1818 = vmatmul.mubr.bf16.gmra.mrb[0].mxu0 %v1727
      %v1819 = vpop.f32.mrb[0].mxu0
      %v1820 = vadd.f32 %v1680, %v1819
      %v1821 = vpop.f32.mrb[0].mxu0
      %v1822 = vpop.f32.mrb[0].mxu0
      %v1823 = vadd.f32 %v1680, %v1822
      %v1824 = vpop.f32.mrb[0].mxu0
      %1825 = vdwg.mxu0
      %v1826 = vld [vmem:[%s255] sm:$0xff]
      %1827 = vmatprep.subr.mxu0 0.0
      %1828 = vmatpush1.msra.mxu0 %v1764
      %1829 = vmatprep.subr.mxu0 0.0
      %1830 = vmatpush1.msra.mxu0 %v1767
      %1831 = vmatprep.subr.mxu0 0.0
      %1832 = vmatpush1.msra.mxu0 %v1772
      %1833 = vmatprep.subr.mxu0 0.0
      %1834 = vmatpush1.msra.mxu0 %v1775
      %1835 = vmatprep.subr.mxu0 0.0
      %1836 = vmatpush1.msra.mxu0 %v1780
      %1837 = vmatprep.subr.mxu0 0.0
      %1838 = vmatpush1.msra.mxu0 %v1783
      %1839 = vmatprep.subr.mxu0 0.0
      %1840 = vmatpush1.msra.mxu0 %v1788
      %1841 = vmatprep.subr.mxu0 0.0
      %1842 = vmatpush1.msra.mxu0 %v1791
      %1843 = vmatprep.subr.mxu0 0.0
      %1844 = vmatpush1.msra.mxu0 %v1796
      %1845 = vmatprep.subr.mxu0 0.0
      %1846 = vmatpush1.msra.mxu0 %v1799
      %1847 = vmatprep.subr.mxu0 0.0
      %1848 = vmatpush1.msra.mxu0 %v1804
      %1849 = vmatprep.subr.mxu0 0.0
      %1850 = vmatpush1.msra.mxu0 %v1807
      %1851 = vmatprep.subr.mxu0 0.0
      %1852 = vmatpush1.msra.mxu0 %v1812
      %1853 = vmatprep.subr.mxu0 0.0
      %1854 = vmatpush1.msra.mxu0 %v1815
      %1855 = vmatprep.subr.mxu0 0.0
      %1856 = vmatpush1.msra.mxu0 %v1820
      %1857 = vmatprep.subr.mxu0 0.0
      %1858 = vmatpush1.msra.mxu0 %v1823
      %1859 = vmatprep.subr.mxu0 0.0
      %1860 = vmatpush1.msra.mxu0 0.0
      %1861 = vmatprep.subr.mxu0 0.0
      %1862 = vmatpush1.msra.mxu0 0.0
      %1863 = vmatprep.subr.mxu0 0.0
      %1864 = vmatpush1.msra.mxu0 0.0
      %1865 = vmatprep.subr.mxu0 0.0
      %1866 = vmatpush1.msra.mxu0 0.0
      %1867 = vmatprep.subr.mxu0 0.0
      %1868 = vmatpush1.msra.mxu0 0.0
      %1869 = vmatprep.subr.mxu0 0.0
      %1870 = vmatpush1.msra.mxu0 0.0
      %1871 = vmatprep.subr.mxu0 0.0
      %1872 = vmatpush1.msra.mxu0 0.0
      %1873 = vmatprep.subr.mxu0 0.0
      %1874 = vmatpush1.msra.mxu0 0.0
      %1875 = vmatprep.subr.mxu0 0.0
      %1876 = vmatpush1.msra.mxu0 0.0
      %1877 = vmatprep.subr.mxu0 0.0
      %1878 = vmatpush1.msra.mxu0 0.0
      %1879 = vmatprep.subr.mxu0 0.0
      %1880 = vmatpush1.msra.mxu0 0.0
      %1881 = vmatprep.subr.mxu0 0.0
      %1882 = vmatpush1.msra.mxu0 0.0
      %1883 = vmatprep.subr.mxu0 0.0
      %1884 = vmatpush1.msra.mxu0 0.0
      %1885 = vmatprep.subr.mxu0 0.0
      %1886 = vmatpush1.msra.mxu0 0.0
      %1887 = vmatprep.subr.mxu0 0.0
      %1888 = vmatpush1.msra.mxu0 0.0
      %1889 = vmatprep.subr.mxu0 0.0
      %1890 = vmatpush1.msra.mxu0 0.0
      %1891 = vmatprep.mubr.f32.mxu0 0.0
      %1892 = vmatmul.mubr.f32.gmra.mrb[0].mxu0 %v1826
      %v1893 = vpop.f32.mrb[0].mxu0
      %v1894 = vadd.f32 0.0, %v1893
      %v1895 = vpop.f32.mrb[0].mxu0
      %1896 = vdwg.mxu0
      %v1897 = vlaneseq
      %v1898 = vshrl.u32 %v1897, 7
      %v1899 = vsub.s32 7, %v1898
      %v1900 = vrot.slane %v277, %v1899
      %v1902 = vsel %vm560, %v1894, 0
      %1904 = vmatprep.subr.mxu0 0.0
      %1905 = vmatpush1.msra.mxu0 %v278
      %1906 = vmatprep.subr.mxu0 0.0
      %1907 = vmatpush1.msra.mxu0 %v279
      %1908 = vmatprep.subr.mxu0 0.0
      %1909 = vmatpush1.msra.mxu0 %v280
      %1910 = vmatprep.subr.mxu0 0.0
      %1911 = vmatpush1.msra.mxu0 %v281
      %1912 = vmatprep.subr.mxu0 0.0
      %1913 = vmatpush1.msra.mxu0 0.0
      %1914 = vmatprep.subr.mxu0 0.0
      %1915 = vmatpush1.msra.mxu0 0.0
      %1916 = vmatprep.subr.mxu0 0.0
      %1917 = vmatpush1.msra.mxu0 0.0
      %1918 = vmatprep.subr.mxu0 0.0
      %1919 = vmatpush1.msra.mxu0 0.0
      %1920 = vmatprep.subr.mxu0 0.0
      %1921 = vmatpush1.msra.mxu0 0.0
      %1922 = vmatprep.subr.mxu0 0.0
      %1923 = vmatpush1.msra.mxu0 0.0
      %1924 = vmatprep.subr.mxu0 0.0
      %1925 = vmatpush1.msra.mxu0 0.0
      %1926 = vmatprep.subr.mxu0 0.0
      %1927 = vmatpush1.msra.mxu0 0.0
      %1928 = vmatprep.subr.mxu0 0.0
      %1929 = vmatpush1.msra.mxu0 0.0
      %1930 = vmatprep.subr.mxu0 0.0
      %1931 = vmatpush1.msra.mxu0 0.0
      %1932 = vmatprep.subr.mxu0 0.0
      %1933 = vmatpush1.msra.mxu0 0.0
      %1934 = vmatprep.subr.mxu0 0.0
      %1935 = vmatpush1.msra.mxu0 0.0
      %1936 = vmatprep.subr.mxu0 0.0
      %1937 = vmatpush1.msra.mxu0 0.0
      %1938 = vmatprep.subr.mxu0 0.0
      %1939 = vmatpush1.msra.mxu0 0.0
      %1940 = vmatprep.subr.mxu0 0.0
      %1941 = vmatpush1.msra.mxu0 0.0
      %1942 = vmatprep.subr.mxu0 0.0
      %1943 = vmatpush1.msra.mxu0 0.0
      %1944 = vmatprep.subr.mxu0 0.0
      %1945 = vmatpush1.msra.mxu0 0.0
      %1946 = vmatprep.subr.mxu0 0.0
      %1947 = vmatpush1.msra.mxu0 0.0
      %1948 = vmatprep.subr.mxu0 0.0
      %1949 = vmatpush1.msra.mxu0 0.0
      %1950 = vmatprep.subr.mxu0 0.0
      %1951 = vmatpush1.msra.mxu0 0.0
      %1952 = vmatprep.subr.mxu0 0.0
      %1953 = vmatpush1.msra.mxu0 0.0
      %1954 = vmatprep.subr.mxu0 0.0
      %1955 = vmatpush1.msra.mxu0 0.0
      %1956 = vmatprep.subr.mxu0 0.0
      %1957 = vmatpush1.msra.mxu0 0.0
      %1958 = vmatprep.subr.mxu0 0.0
      %1959 = vmatpush1.msra.mxu0 0.0
      %1960 = vmatprep.subr.mxu0 0.0
      %1961 = vmatpush1.msra.mxu0 0.0
      %1962 = vmatprep.subr.mxu0 0.0
      %1963 = vmatpush1.msra.mxu0 0.0
      %1964 = vmatprep.subr.mxu0 0.0
      %1965 = vmatpush1.msra.mxu0 0.0
      %1966 = vmatprep.subr.mxu0 0.0
      %1967 = vmatpush1.msra.mxu0 0.0
      %1968 = vmatprep.mubr.f32.mxu0 0.0
      %1969 = vmatmul.mubr.f32.gmra.mrb[0].mxu0 %v1902
      %v1970 = vpop.f32.mrb[0].mxu0
      %v1971 = vadd.f32 %v1900, %v1970
      %v1972 = vpop.f32.mrb[0].mxu0
      %1973 = vdwg.mxu0
      %vm1974 = vcmask 31744
      %1975 = vst.msk [vmem:[%s259] sm:$0xff] %vm1974, %v1971
      %p1976 = scmp.lt.s32.totalorder %s16, 1
      %s1977 = scalar_select %p1976, %s16, 1
      %s1978 = smul.addr %s1977, 8
      %s1979 = scalar_lea.vmem %s5, %s1978
      // Predicated region
      $region41: #{tpu_custom_call.1} parent=39 // pred_check
        %p1980 = pneg %p154
      $region42: #{tpu_custom_call.1} parent=39 // pred_check_branch
        %1982 = sbr.rel (%p1980) target = $region44
      $region43: #{tpu_custom_call.1} parent=39 // pred_region
        _
      $region44: #{tpu_custom_call.1} parent=39 // pred_fallthru
        _
    $region40: #{tpu_custom_call.1} parent=5 // pred_fallthru
      _
    %p1983 = scmp.le.s32.totalorder 2, %s11
    // Predicated region
    $region45: #{tpu_custom_call.1} parent=5 // pred_check
      %p1984 = pneg %p1983
    $region46: #{tpu_custom_call.1} parent=5 // pred_check_branch
      %1986 = sbr.rel (%p1984) target = $region48
    $region47: #{tpu_custom_call.1} parent=5 // pred_region
      %s1987 = ssub.s32 %s11, 2
      // Predicated region
      $region49: #{tpu_custom_call.1} parent=47 // pred_check
        %p1988 = pneg %p160
      $region50: #{tpu_custom_call.1} parent=47 // pred_check_branch
        %1990 = sbr.rel (%p1988) target = $region52
      $region51: #{tpu_custom_call.1} parent=47 // pred_region
        %p1991 = scmp.lt.s32.totalorder %s17, 1
        %s1992 = scalar_select %p1991, %s17, 1
        %s1993 = smul.addr %s1992, 8
        %s1994 = scalar_lea.vmem %s5, %s1993
      $region52: #{tpu_custom_call.1} parent=47 // pred_fallthru
        _
    $region48: #{tpu_custom_call.1} parent=5 // pred_fallthru
      _
  $region6: #{tpu_custom_call.1} parent=0 // loop_footer
    %s15 = sadd.s32 1, %s11
  $region7: #{tpu_custom_call.1} parent=0 // loop_footer_branch
    %10 = sbr.rel target = $region3
  $region8: #{tpu_custom_call.1} parent=0 // loop_exit
    _

</llo_original>
